<compile_context>
chip_gen: v7x
topology: tpu7x:2x2x1
jax: 0.10.0
libtpu: 0.0.40
codegen_flags: <defaults>
</compile_context>

<pallas_src>
import jax
import jax.numpy as jnp
from jax import lax
from jax.experimental import pallas as pl
from jax.experimental.pallas import tpu as pltpu


STYLE_WEIGHT = 1.0
CONTENT_WEIGHT = 1.0
NUM_ITERATIONS = 100
TEXTURE_RES = 16
_LANES = 128


# --------------------------------------------------------------------------
# Single fused Pallas kernel (the hot paths of Trainer.forward)
# --------------------------------------------------------------------------

def _make_fused_kernel(n_content, content_counts, n_pal, n_tex):
    """Build the fused loss kernel.

    ref order:
      inputs : t_flat, s_block, (tgt_i, src_i) * n_content, color, palette
      output : (1, 128) f32 row  [lane0 = style, lanes 1..n = per-layer mse,
                                  lane 1+n_content = color mean]
      scratch: (Nt, C) bf16 normalized-target cache, (Nt, 1) f32 running max
    """

    def kernel(*refs):
        t_ref, s_ref = refs[0], refs[1]
        content_refs = refs[2:2 + 2 * n_content]
        col_ref = refs[2 + 2 * n_content]
        pal_ref = refs[3 + 2 * n_content]
        o_ref = refs[4 + 2 * n_content]
        tn_scr = refs[5 + 2 * n_content]
        max_scr = refs[6 + 2 * n_content]

        j = pl.program_id(0)
        eps = 1e-12

        # -- step 0: normalize target features once (cache as bf16), init max
        @pl.when(j == 0)
        def _init():
            t = t_ref[...]
            t_n = t * lax.rsqrt(jnp.sum(t * t, axis=-1, keepdims=True) + eps)
            tn_scr[...] = t_n.astype(jnp.bfloat16)
            max_scr[...] = jnp.full_like(max_scr, -jnp.inf)

        # -- NNFM: bf16 cosine-sim block on the MXU + blockwise running max --
        s = s_ref[...]
        s_n = (s * lax.rsqrt(jnp.sum(s * s, axis=-1, keepdims=True) + eps)
               ).astype(jnp.bfloat16)
        sim = lax.dot_general(tn_scr[...], s_n, (((1,), (1,)), ((), ())),
                              preferred_element_type=jnp.float32)   # (Nt, tile)
        max_scr[...] = jnp.maximum(max_scr[...],
                                   jnp.max(sim, axis=-1, keepdims=True))

        # -- last step: finalize all losses, one lane-dense output row --------
        @pl.when(j == pl.num_programs(0) - 1)
        def _finalize():
            style_mean = jnp.mean(1.0 - max_scr[...])

            # per-layer MSE: sum of squared diffs / true element count
            # (zero-padded tails contribute 0, so sums are exact)
            mses = []
            for li in range(n_content):
                a = content_refs[2 * li][...]
                b = content_refs[2 * li + 1][...]
                d = a - b
                mses.append(jnp.sum(d * d) / jnp.float32(content_counts[li]))

            # color: ||c||^2 + ||m||^2 - 2 c.m^T  (no N*K*C intermediate)
            c = col_ref[...]                                     # (N, 128)
            m = pal_ref[...]                                     # (K, 128)
            c2 = jnp.sum(c * c, axis=-1, keepdims=True)          # (N, 1)
            ones_row = jnp.ones((1, c.shape[-1]), jnp.float32)
            m2 = lax.dot_general(ones_row, m * m, (((1,), (1,)), ((), ())),
                                 preferred_element_type=jnp.float32)  # (1, K)
            cm = lax.dot_general(c, m, (((1,), (1,)), ((), ())),
                                 preferred_element_type=jnp.float32)  # (N, K)
            d2 = jnp.maximum(c2 + m2 - 2.0 * cm, 0.0)
            if n_pal != pal_ref.shape[0]:            # padded palette rows
                colj = lax.broadcasted_iota(jnp.int32, d2.shape, 1)
                d2 = jnp.where(colj < n_pal, d2, jnp.inf)
            dmin = jnp.sqrt(jnp.min(d2, axis=-1, keepdims=True))  # (N, 1)
            if n_tex != col_ref.shape[0]:            # padded texel rows
                rowi = lax.broadcasted_iota(jnp.int32, dmin.shape, 0)
                dmin = jnp.where(rowi < n_tex, dmin, 0.0)
            color_mean = jnp.sum(dmin) / jnp.float32(n_tex)

            lane = lax.broadcasted_iota(jnp.int32, (1, _LANES), 1)
            row = jnp.where(lane == 0, style_mean, 0.0)
            for li, mse in enumerate(mses):
                row = row + jnp.where(lane == (1 + li), mse, 0.0)
            row = row + jnp.where(lane == (1 + n_content), color_mean, 0.0)
            o_ref[...] = row.astype(jnp.float32)

    return kernel


def _pick_tile(n, candidates=(512, 256, 128)):
    for t in candidates:
        if n >= t and n % t == 0:
            return t
    return n


def _fused_losses(t_flat, s_flat, content_pairs, content_counts,
                  color_rows, palette_rows, n_pal, n_tex):
    """One pallas_call computing style / per-layer content / color losses."""
    Nt, C = t_flat.shape
    Ns = s_flat.shape[0]
    tile_ns = _pick_tile(Ns)
    grid = (Ns // tile_ns,)
    n_content = len(content_pairs)

    in_specs = [pl.BlockSpec((Nt, C), lambda j: (0, 0)),        # target (resident)
                pl.BlockSpec((tile_ns, C), lambda j: (j, 0))]   # style row blocks
    inputs = [t_flat, s_flat]
    for a, b in content_pairs:
        in_specs.append(pl.BlockSpec(a.shape, lambda j: (0, 0)))
        in_specs.append(pl.BlockSpec(b.shape, lambda j: (0, 0)))
        inputs.extend([a, b])
    in_specs.append(pl.BlockSpec(color_rows.shape, lambda j: (0, 0)))
    in_specs.append(pl.BlockSpec(palette_rows.shape, lambda j: (0, 0)))
    inputs.extend([color_rows, palette_rows])

    kernel = _make_fused_kernel(n_content, tuple(content_counts), n_pal, n_tex)

    out = pl.pallas_call(
        kernel,
        out_shape=jax.ShapeDtypeStruct((1, _LANES), jnp.float32),
        grid_spec=pltpu.PrefetchScalarGridSpec(
            num_scalar_prefetch=0,
            grid=grid,
            in_specs=in_specs,
            out_specs=pl.BlockSpec((1, _LANES), lambda j: (0, 0)),
            scratch_shapes=[pltpu.VMEM((Nt, C), jnp.bfloat16),   # normalized t
                            pltpu.VMEM((Nt, 1), jnp.float32)],   # running max
        ),
        compiler_params=pltpu.CompilerParams(
            dimension_semantics=("arbitrary",)),   # style-row axis is a reduction
    )(*inputs)
    return out[0]                                  # (128,) loss lanes


# --------------------------------------------------------------------------
# Plain-JAX glue
# --------------------------------------------------------------------------

def _flatten_nchw_to_nc(x):
    """(B, C, H, W) -> (B*H*W, C)   [matches .permute(0,2,3,1).view(-1, C)]"""
    b, c, h, w = x.shape
    return jnp.transpose(x, (0, 2, 3, 1)).reshape(-1, c)


def _pad_lanes(x, lanes=_LANES):
    n, c = x.shape
    if c < lanes:
        x = jnp.pad(x, ((0, 0), (0, lanes - c)))
    return x


def _pad_rows(x, mult=8):
    pad = (-x.shape[0]) % mult
    if pad:
        x = jnp.pad(x, ((0, pad), (0, 0)))
    return x


def _to_rows128(x):
    """Flatten any feature map to (rows, 128) with zero padding; return the
    true element count so the kernel can compute an exact mean."""
    flat = x.reshape(-1)
    n = flat.shape[0]
    pad = (-n) % (8 * _LANES)
    if pad:
        flat = jnp.pad(flat, (0, pad))
    return flat.reshape(-1, _LANES), n


class Trainer:
    """JAX/Pallas port of the PyTorch Trainer (forward pass only)."""

    def __init__(self, key):
        k1, k2 = jax.random.split(key)
        # kd / ks mip-0 maps, NCHW (1, 3, texture_res, texture_res)
        self.kd = jax.random.uniform(k1, (1, 3, TEXTURE_RES, TEXTURE_RES),
                                     dtype=jnp.float32)
        self.ks = jax.random.uniform(k2, (1, 3, TEXTURE_RES, TEXTURE_RES),
                                     dtype=jnp.float32)

    def forward(self, style_features, target_style_features,
                src_content_features, target_content_features,
                mean_colors, i):
        # TODO(synk): train_render (nvdiffrast rasterizer) and the pretrained
        # VGG feature extractors have no Pallas equivalent; their feature-map
        # outputs are taken as inputs to forward().
        # TODO(synk): wrap the fused kernel in jax.custom_vjp so color_loss
        # gradients reach self.kd when this is used for actual training.

        s_flat = _flatten_nchw_to_nc(style_features)           # (Ns, C)
        t_flat = _flatten_nchw_to_nc(target_style_features)    # (Nt, C)

        content_pairs, content_counts = [], []
        for tc, sc in zip(target_content_features, src_content_features):
            a, na = _to_rows128(tc)
            b, _ = _to_rows128(sc)
            content_pairs.append((a, b))
            content_counts.append(na)

        color_image = _flatten_nchw_to_nc(self.kd)              # (H*W, 3)
        n_tex = color_image.shape[0]
        n_pal = mean_colors.shape[0]
        color_rows = _pad_rows(_pad_lanes(color_image))
        palette_rows = _pad_rows(_pad_lanes(mean_colors))

        row = _fused_losses(t_flat, s_flat, content_pairs, content_counts,
                            color_rows, palette_rows, n_pal, n_tex)

        n_c = len(content_pairs)
        style_loss = STYLE_WEIGHT * row[0]
        if n_c:
            content_loss = CONTENT_WEIGHT * jnp.sum(row[1:1 + n_c])
        else:
            content_loss = jnp.float32(0.0)
        color_mean = row[1 + n_c]
        weight = 0.083 * NUM_ITERATIONS * jnp.exp(
            jnp.maximum(jnp.float32(0.5),
                        2.0 - jnp.float32(i) * 2.0 / NUM_ITERATIONS))
        color_loss = weight * color_mean

        total_loss = style_loss + content_loss + color_loss
        return total_loss, style_loss, content_loss, color_loss


# --------------------------------------------------------------------------

if __name__ == "__main__":
    key = jax.random.PRNGKey(0)
    keys = jax.random.split(key, 8)

    trainer = Trainer(keys[0])

    # synthetic VGG-style feature maps (NCHW), small shapes
    C_FEAT, HF, WF = 128, 16, 16
    style_features = jax.random.normal(keys[1], (1, C_FEAT, HF, WF), jnp.float32)
    target_style_features = jax.random.normal(keys[2], (1, C_FEAT, HF, WF),
                                              jnp.float32)

    src_content_features = [
        jax.random.normal(keys[3], (1, 64, 16, 16), jnp.float32),
        jax.random.normal(keys[4], (1, 128, 8, 8), jnp.float32),
    ]
    target_content_features = [
        jax.random.normal(keys[5], (1, 64, 16, 16), jnp.float32),
        jax.random.normal(keys[6], (1, 128, 8, 8), jnp.float32),
    ]

    # palette of mean colors extracted from the style image (synthetic)
    mean_colors = jax.random.uniform(keys[7], (8, 3), dtype=jnp.float32)

    total, style_l, content_l, color_l = trainer.forward(
        style_features, target_style_features,
        src_content_features, target_content_features,
        mean_colors, i=0)

    jax.block_until_ready((total, style_l, content_l, color_l))
    print("KERNEL_OK")
</pallas_src>

<mosaic_0001>
module attributes {stable_mosaic.version = 11 : i64} {
  func.func @kernel(%arg0: i32, %arg1: memref<256x128xf32, #tpu.memory_space<vmem>>, %arg2: memref<256x128xf32, #tpu.memory_space<vmem>>, %arg3: memref<128x128xf32, #tpu.memory_space<vmem>>, %arg4: memref<128x128xf32, #tpu.memory_space<vmem>>, %arg5: memref<64x128xf32, #tpu.memory_space<vmem>>, %arg6: memref<64x128xf32, #tpu.memory_space<vmem>>, %arg7: memref<256x128xf32, #tpu.memory_space<vmem>>, %arg8: memref<8x128xf32, #tpu.memory_space<vmem>>, %arg9: memref<1x128xf32, #tpu.memory_space<vmem>>, %arg10: memref<256x128xbf16, #tpu.memory_space<vmem>>, %arg11: memref<256x1xf32, #tpu.memory_space<vmem>>) attributes {dimension_semantics = [#tpu.dimension_semantics<arbitrary>], iteration_bounds = array<i64: 1>, scalar_prefetch = 0 : i64, scratch_operands = 2 : i64, tpu.core_type = #tpu.core_type<tc>, window_params = [{pipeline_mode = #tpu.pipeline_mode<synchronous>, transform_indices = @transform_0, window_bounds = array<i64: 256, 128>}, {transform_indices = @transform_1, window_bounds = array<i64: 256, 128>}, {pipeline_mode = #tpu.pipeline_mode<synchronous>, transform_indices = @transform_2, window_bounds = array<i64: 128, 128>}, {pipeline_mode = #tpu.pipeline_mode<synchronous>, transform_indices = @transform_3, window_bounds = array<i64: 128, 128>}, {pipeline_mode = #tpu.pipeline_mode<synchronous>, transform_indices = @transform_4, window_bounds = array<i64: 64, 128>}, {pipeline_mode = #tpu.pipeline_mode<synchronous>, transform_indices = @transform_5, window_bounds = array<i64: 64, 128>}, {pipeline_mode = #tpu.pipeline_mode<synchronous>, transform_indices = @transform_6, window_bounds = array<i64: 256, 128>}, {pipeline_mode = #tpu.pipeline_mode<synchronous>, transform_indices = @transform_7, window_bounds = array<i64: 8, 128>}, {pipeline_mode = #tpu.pipeline_mode<synchronous>, transform_indices = @transform_8, window_bounds = array<i64: 1, 128>}]} {
    %c0_i32 = arith.constant 0 : i32
    %0 = arith.cmpi eq, %arg0, %c0_i32 : i32
    %1 = arith.extui %0 : i1 to i32
    %c0_i32_0 = arith.constant 0 : i32
    %2 = arith.cmpi ne, %1, %c0_i32_0 : i32
    scf.if %2 {
      %c0_13 = arith.constant 0 : index
      %c0_14 = arith.constant 0 : index
      %23 = vector.load %arg1[%c0_13, %c0_14] : memref<256x128xf32, #tpu.memory_space<vmem>>, vector<256x128xf32>
      %24 = arith.mulf %23, %23 : vector<256x128xf32>
      %cst_15 = arith.constant dense<0.000000e+00> : vector<256xf32>
      %25 = vector.multi_reduction <add>, %24, %cst_15 [1] : vector<256x128xf32> to vector<256xf32>
      %26 = vector.shape_cast %25 : vector<256xf32> to vector<256x1xf32>
      %cst_16 = arith.constant 9.99999996E-13 : f32
      %27 = vector.broadcast %cst_16 : f32 to vector<256x1xf32>
      %28 = arith.addf %26, %27 : vector<256x1xf32>
      %29 = math.rsqrt %28 : vector<256x1xf32>
      %30 = vector.broadcast %29 : vector<256x1xf32> to vector<256x128xf32>
      %31 = arith.mulf %23, %30 : vector<256x128xf32>
      %32 = arith.truncf %31 : vector<256x128xf32> to vector<256x128xbf16>
      %c0_17 = arith.constant 0 : index
      %c0_18 = arith.constant 0 : index
      %33 = vector.load %arg10[%c0_17, %c0_18] : memref<256x128xbf16, #tpu.memory_space<vmem>>, vector<256x128xbf16>
      tpu.vector_store %arg10[%c0_17, %c0_18], %32 {strides = array<i32>} : memref<256x128xbf16, #tpu.memory_space<vmem>>, vector<256x128xbf16>,
      %cst_19 = arith.constant 0xFF800000 : f32
      %34 = vector.broadcast %cst_19 : f32 to vector<256x1xf32>
      %c0_20 = arith.constant 0 : index
      %c0_21 = arith.constant 0 : index
      %35 = vector.load %arg11[%c0_20, %c0_21] : memref<256x1xf32, #tpu.memory_space<vmem>>, vector<256x1xf32>
      tpu.vector_store %arg11[%c0_20, %c0_21], %34 {strides = array<i32>} : memref<256x1xf32, #tpu.memory_space<vmem>>, vector<256x1xf32>,
    } else {
    }
    %c0 = arith.constant 0 : index
    %c0_1 = arith.constant 0 : index
    %3 = vector.load %arg2[%c0, %c0_1] : memref<256x128xf32, #tpu.memory_space<vmem>>, vector<256x128xf32>
    %4 = arith.mulf %3, %3 : vector<256x128xf32>
    %cst = arith.constant dense<0.000000e+00> : vector<256xf32>
    %5 = vector.multi_reduction <add>, %4, %cst [1] : vector<256x128xf32> to vector<256xf32>
    %6 = vector.shape_cast %5 : vector<256xf32> to vector<256x1xf32>
    %cst_2 = arith.constant 9.99999996E-13 : f32
    %7 = vector.broadcast %cst_2 : f32 to vector<256x1xf32>
    %8 = arith.addf %6, %7 : vector<256x1xf32>
    %9 = math.rsqrt %8 : vector<256x1xf32>
    %10 = vector.broadcast %9 : vector<256x1xf32> to vector<256x128xf32>
    %11 = arith.mulf %3, %10 : vector<256x128xf32>
    %12 = arith.truncf %11 : vector<256x128xf32> to vector<256x128xbf16>
    %c0_3 = arith.constant 0 : index
    %c0_4 = arith.constant 0 : index
    %13 = vector.load %arg10[%c0_3, %c0_4] : memref<256x128xbf16, #tpu.memory_space<vmem>>, vector<256x128xbf16>
    %cst_5 = arith.constant dense<0.000000e+00> : vector<256x256xf32>
    %14 = tpu.matmul %13, %12, %cst_5 {dimension_numbers = #tpu.dot_dimension_numbers<[1], [1], [0], [0], [0, 0, 1, 0], [], []>} : vector<256x128xbf16>, vector<256x128xbf16>, vector<256x256xf32> -> vector<256x256xf32>
    %c0_6 = arith.constant 0 : index
    %c0_7 = arith.constant 0 : index
    %15 = vector.load %arg11[%c0_6, %c0_7] : memref<256x1xf32, #tpu.memory_space<vmem>>, vector<256x1xf32>
    %cst_8 = arith.constant dense<0xFF800000> : vector<256xf32>
    %16 = vector.multi_reduction <maximumf>, %14, %cst_8 [1] : vector<256x256xf32> to vector<256xf32>
    %17 = vector.shape_cast %16 : vector<256xf32> to vector<256x1xf32>
    %18 = arith.maximumf %15, %17 : vector<256x1xf32>
    %c0_9 = arith.constant 0 : index
    %c0_10 = arith.constant 0 : index
    %19 = vector.load %arg11[%c0_9, %c0_10] : memref<256x1xf32, #tpu.memory_space<vmem>>, vector<256x1xf32>
    tpu.vector_store %arg11[%c0_9, %c0_10], %18 {strides = array<i32>} : memref<256x1xf32, #tpu.memory_space<vmem>>, vector<256x1xf32>,
    %c0_i32_11 = arith.constant 0 : i32
    %20 = arith.cmpi eq, %arg0, %c0_i32_11 : i32
    %21 = arith.extui %20 : i1 to i32
    %c0_i32_12 = arith.constant 0 : i32
    %22 = arith.cmpi ne, %21, %c0_i32_12 : i32
    scf.if %22 {
      %c0_13 = arith.constant 0 : index
      %c0_14 = arith.constant 0 : index
      %23 = vector.load %arg11[%c0_13, %c0_14] : memref<256x1xf32, #tpu.memory_space<vmem>>, vector<256x1xf32>
      %cst_15 = arith.constant 1.000000e+00 : f32
      %24 = vector.broadcast %cst_15 : f32 to vector<256x1xf32>
      %25 = arith.subf %24, %23 : vector<256x1xf32>
      %26 = vector.shape_cast %25 : vector<256x1xf32> to vector<1x256x1xf32>
      %cst_16 = arith.constant dense<0.000000e+00> : vector<1xf32>
      %27 = vector.multi_reduction <add>, %26, %cst_16 [1, 2] : vector<1x256x1xf32> to vector<1xf32>
      %28 = vector.shape_cast %27 : vector<1xf32> to vector<1x1x1xf32>
      %29 = vector.extract %28[0, 0, 0] : f32 from vector<1x1x1xf32>
      %cst_17 = arith.constant 2.560000e+02 : f32
      %30 = arith.divf %29, %cst_17 : f32
      %c0_18 = arith.constant 0 : index
      %c0_19 = arith.constant 0 : index
      %31 = vector.load %arg3[%c0_18, %c0_19] : memref<128x128xf32, #tpu.memory_space<vmem>>, vector<128x128xf32>
      %c0_20 = arith.constant 0 : index
      %c0_21 = arith.constant 0 : index
      %32 = vector.load %arg4[%c0_20, %c0_21] : memref<128x128xf32, #tpu.memory_space<vmem>>, vector<128x128xf32>
      %33 = arith.subf %31, %32 : vector<128x128xf32>
      %34 = arith.mulf %33, %33 : vector<128x128xf32>
      %35 = vector.shape_cast %34 : vector<128x128xf32> to vector<1x128x128xf32>
      %cst_22 = arith.constant dense<0.000000e+00> : vector<1xf32>
      %36 = vector.multi_reduction <add>, %35, %cst_22 [1, 2] : vector<1x128x128xf32> to vector<1xf32>
      %37 = vector.shape_cast %36 : vector<1xf32> to vector<1x1x1xf32>
      %38 = vector.extract %37[0, 0, 0] : f32 from vector<1x1x1xf32>
      %cst_23 = arith.constant 1.638400e+04 : f32
      %39 = arith.divf %38, %cst_23 : f32
      %c0_24 = arith.constant 0 : index
      %c0_25 = arith.constant 0 : index
      %40 = vector.load %arg5[%c0_24, %c0_25] : memref<64x128xf32, #tpu.memory_space<vmem>>, vector<64x128xf32>
      %c0_26 = arith.constant 0 : index
      %c0_27 = arith.constant 0 : index
      %41 = vector.load %arg6[%c0_26, %c0_27] : memref<64x128xf32, #tpu.memory_space<vmem>>, vector<64x128xf32>
      %42 = arith.subf %40, %41 : vector<64x128xf32>
      %43 = arith.mulf %42, %42 : vector<64x128xf32>
      %44 = vector.shape_cast %43 : vector<64x128xf32> to vector<1x64x128xf32>
      %cst_28 = arith.constant dense<0.000000e+00> : vector<1xf32>
      %45 = vector.multi_reduction <add>, %44, %cst_28 [1, 2] : vector<1x64x128xf32> to vector<1xf32>
      %46 = vector.shape_cast %45 : vector<1xf32> to vector<1x1x1xf32>
      %47 = vector.extract %46[0, 0, 0] : f32 from vector<1x1x1xf32>
      %cst_29 = arith.constant 8.192000e+03 : f32
      %48 = arith.divf %47, %cst_29 : f32
      %c0_30 = arith.constant 0 : index
      %c0_31 = arith.constant 0 : index
      %49 = vector.load %arg7[%c0_30, %c0_31] : memref<256x128xf32, #tpu.memory_space<vmem>>, vector<256x128xf32>
      %c0_32 = arith.constant 0 : index
      %c0_33 = arith.constant 0 : index
      %50 = vector.load %arg8[%c0_32, %c0_33] : memref<8x128xf32, #tpu.memory_space<vmem>>, vector<8x128xf32>
      %51 = arith.mulf %49, %49 : vector<256x128xf32>
      %cst_34 = arith.constant dense<0.000000e+00> : vector<256xf32>
      %52 = vector.multi_reduction <add>, %51, %cst_34 [1] : vector<256x128xf32> to vector<256xf32>
      %53 = vector.shape_cast %52 : vector<256xf32> to vector<256x1xf32>
      %cst_35 = arith.constant 1.000000e+00 : f32
      %54 = vector.broadcast %cst_35 : f32 to vector<1x128xf32>
      %55 = arith.mulf %50, %50 : vector<8x128xf32>
      %cst_36 = arith.constant dense<0.000000e+00> : vector<1x8xf32>
      %56 = tpu.matmul %54, %55, %cst_36 {dimension_numbers = #tpu.dot_dimension_numbers<[1], [1], [0], [0], [0, 0, 1, 0], [], []>} : vector<1x128xf32>, vector<8x128xf32>, vector<1x8xf32> -> vector<1x8xf32>
      %cst_37 = arith.constant dense<0.000000e+00> : vector<256x8xf32>
      %57 = tpu.matmul %49, %50, %cst_37 {dimension_numbers = #tpu.dot_dimension_numbers<[1], [1], [0], [0], [0, 0, 1, 0], [], []>} : vector<256x128xf32>, vector<8x128xf32>, vector<256x8xf32> -> vector<256x8xf32>
      %58 = vector.broadcast %53 : vector<256x1xf32> to vector<256x8xf32>
      %59 = vector.broadcast %56 : vector<1x8xf32> to vector<256x8xf32>
      %60 = arith.addf %58, %59 : vector<256x8xf32>
      %cst_38 = arith.constant 2.000000e+00 : f32
      %61 = vector.broadcast %cst_38 : f32 to vector<256x8xf32>
      %62 = arith.mulf %61, %57 : vector<256x8xf32>
      %63 = arith.subf %60, %62 : vector<256x8xf32>
      %cst_39 = arith.constant 0.000000e+00 : f32
      %64 = vector.broadcast %cst_39 : f32 to vector<256x8xf32>
      %65 = arith.maximumf %63, %64 : vector<256x8xf32>
      %cst_40 = arith.constant dense<0x7F800000> : vector<256xf32>
      %66 = vector.multi_reduction <minimumf>, %65, %cst_40 [1] : vector<256x8xf32> to vector<256xf32>
      %67 = vector.shape_cast %66 : vector<256xf32> to vector<256x1xf32>
      %68 = math.sqrt %67 : vector<256x1xf32>
      %69 = vector.shape_cast %68 : vector<256x1xf32> to vector<1x256x1xf32>
      %cst_41 = arith.constant dense<0.000000e+00> : vector<1xf32>
      %70 = vector.multi_reduction <add>, %69, %cst_41 [1, 2] : vector<1x256x1xf32> to vector<1xf32>
      %71 = vector.shape_cast %70 : vector<1xf32> to vector<1x1x1xf32>
      %72 = vector.extract %71[0, 0, 0] : f32 from vector<1x1x1xf32>
      %cst_42 = arith.constant 2.560000e+02 : f32
      %73 = arith.divf %72, %cst_42 : f32
      %74 = tpu.iota {dimensions = array<i32: 1>} : vector<1x128xi32>
      %c0_i32_43 = arith.constant 0 : i32
      %75 = vector.broadcast %c0_i32_43 : i32 to vector<1x128xi32>
      %76 = arith.cmpi eq, %74, %75 : vector<1x128xi32>
      %cst_44 = arith.constant 0.000000e+00 : f32
      %77 = vector.broadcast %30 : f32 to vector<1x128xf32>
      %78 = vector.broadcast %cst_44 : f32 to vector<1x128xf32>
      %79 = arith.select %76, %77, %78 : vector<1x128xi1>, vector<1x128xf32>
      %c1_i32 = arith.constant 1 : i32
      %80 = vector.broadcast %c1_i32 : i32 to vector<1x128xi32>
      %81 = arith.cmpi eq, %74, %80 : vector<1x128xi32>
      %cst_45 = arith.constant 0.000000e+00 : f32
      %82 = vector.broadcast %39 : f32 to vector<1x128xf32>
      %83 = vector.broadcast %cst_45 : f32 to vector<1x128xf32>
      %84 = arith.select %81, %82, %83 : vector<1x128xi1>, vector<1x128xf32>
      %85 = arith.addf %79, %84 : vector<1x128xf32>
      %c2_i32 = arith.constant 2 : i32
      %86 = vector.broadcast %c2_i32 : i32 to vector<1x128xi32>
      %87 = arith.cmpi eq, %74, %86 : vector<1x128xi32>
      %cst_46 = arith.constant 0.000000e+00 : f32
      %88 = vector.broadcast %48 : f32 to vector<1x128xf32>
      %89 = vector.broadcast %cst_46 : f32 to vector<1x128xf32>
      %90 = arith.select %87, %88, %89 : vector<1x128xi1>, vector<1x128xf32>
      %91 = arith.addf %85, %90 : vector<1x128xf32>
      %c3_i32 = arith.constant 3 : i32
      %92 = vector.broadcast %c3_i32 : i32 to vector<1x128xi32>
      %93 = arith.cmpi eq, %74, %92 : vector<1x128xi32>
      %cst_47 = arith.constant 0.000000e+00 : f32
      %94 = vector.broadcast %73 : f32 to vector<1x128xf32>
      %95 = vector.broadcast %cst_47 : f32 to vector<1x128xf32>
      %96 = arith.select %93, %94, %95 : vector<1x128xi1>, vector<1x128xf32>
      %97 = arith.addf %91, %96 : vector<1x128xf32>
      %c0_48 = arith.constant 0 : index
      %c0_49 = arith.constant 0 : index
      %98 = vector.load %arg9[%c0_48, %c0_49] : memref<1x128xf32, #tpu.memory_space<vmem>>, vector<1x128xf32>
      tpu.vector_store %arg9[%c0_48, %c0_49], %97 {strides = array<i32>} : memref<1x128xf32, #tpu.memory_space<vmem>>, vector<1x128xf32>,
    } else {
    }
    return
  }
  func.func @transform_0(%arg0: i32) -> (i32, i32) {
    %c0_i32 = arith.constant 0 : i32
    %c0_i32_0 = arith.constant 0 : i32
    %c0_i32_1 = arith.constant 0 : i32
    return %c0_i32, %c0_i32_0 : i32, i32
  }
  func.func @transform_1(%arg0: i32) -> (i32, i32) {
    %c0_i32 = arith.constant 0 : i32
    %c0_i32_0 = arith.constant 0 : i32
    return %arg0, %c0_i32 : i32, i32
  }
  func.func @transform_2(%arg0: i32) -> (i32, i32) {
    %c0_i32 = arith.constant 0 : i32
    %c0_i32_0 = arith.constant 0 : i32
    %c0_i32_1 = arith.constant 0 : i32
    return %c0_i32, %c0_i32_0 : i32, i32
  }
  func.func @transform_3(%arg0: i32) -> (i32, i32) {
    %c0_i32 = arith.constant 0 : i32
    %c0_i32_0 = arith.constant 0 : i32
    %c0_i32_1 = arith.constant 0 : i32
    return %c0_i32, %c0_i32_0 : i32, i32
  }
  func.func @transform_4(%arg0: i32) -> (i32, i32) {
    %c0_i32 = arith.constant 0 : i32
    %c0_i32_0 = arith.constant 0 : i32
    %c0_i32_1 = arith.constant 0 : i32
    return %c0_i32, %c0_i32_0 : i32, i32
  }
  func.func @transform_5(%arg0: i32) -> (i32, i32) {
    %c0_i32 = arith.constant 0 : i32
    %c0_i32_0 = arith.constant 0 : i32
    %c0_i32_1 = arith.constant 0 : i32
    return %c0_i32, %c0_i32_0 : i32, i32
  }
  func.func @transform_6(%arg0: i32) -> (i32, i32) {
    %c0_i32 = arith.constant 0 : i32
    %c0_i32_0 = arith.constant 0 : i32
    %c0_i32_1 = arith.constant 0 : i32
    return %c0_i32, %c0_i32_0 : i32, i32
  }
  func.func @transform_7(%arg0: i32) -> (i32, i32) {
    %c0_i32 = arith.constant 0 : i32
    %c0_i32_0 = arith.constant 0 : i32
    %c0_i32_1 = arith.constant 0 : i32
    return %c0_i32, %c0_i32_0 : i32, i32
  }
  func.func @transform_8(%arg0: i32) -> (i32, i32) {
    %c0_i32 = arith.constant 0 : i32
    %c0_i32_0 = arith.constant 0 : i32
    %c0_i32_1 = arith.constant 0 : i32
    return %c0_i32, %c0_i32_0 : i32, i32
  }
}

</mosaic_0001>

<llo_original>
// kernel: tpu_custom_call.1
$region0: #{tpu_custom_call.1}
  #allocation0 [shape = 'u32[]', space=smem, size = 0x4, offset = 0x4, fixed_abs, tag = 'smem constant byte address 0x4 - core index']
  #allocation1 [shape = 'u32[144,128]{1,0:T(1,128)}', space=vmem, size = 0x12000, scoped, tag = 'internal scratch']
  #allocation2 [shape = 'bf16[256,128]{1,0:T(16,128)(2,1)}', space=vmem, size = 0x10000, scoped, tag = 'scratch operand']
  #allocation3 [shape = 'f32[256,1]{1,0:T(8,128)}', space=vmem, size = 0x20000, scoped, tag = 'scratch operand']
  %s0 = inlined_call_operand.hbm [shape: f32[256,128], index: 0, kind: input, shape index: {}]
  %s1 = inlined_call_operand.hbm [shape: f32[256,128], index: 1, kind: input, shape index: {}]
  %s2 = inlined_call_operand.hbm [shape: f32[128,128], index: 2, kind: input, shape index: {}]
  %s3 = inlined_call_operand.hbm [shape: f32[128,128], index: 3, kind: input, shape index: {}]
  %s4 = inlined_call_operand.hbm [shape: f32[64,128], index: 4, kind: input, shape index: {}]
  %s5 = inlined_call_operand.hbm [shape: f32[64,128], index: 5, kind: input, shape index: {}]
  %s6 = inlined_call_operand.hbm [shape: f32[256,128], index: 6, kind: input, shape index: {}]
  %s7 = inlined_call_operand.vmem [shape: f32[8,128], index: 7, kind: input, shape index: {}]
  %s8 = inlined_call_operand.hbm [shape: f32[1,128], index: 8, kind: output, shape index: {}]
  %s9 = sld [smem:[#allocation0]]
  $region78: #{tpu_custom_call.1} parent=0
    _
  %s11 = ssub.s32 1, %s9
  %s12 = scalar_select 0, %s11, %s9
  $region1: #{tpu_custom_call.1} parent=0
    #allocation4 [shape = 'u8[131072]{0}', space=vmem, size = 0x20000, scoped, tag = 'input window, operand 0, single buffered']
    #allocation5 [shape = 's32[1]{0}', space=sflag, size = 0x4, scoped, tag = 'scoped memory for tpu_custom_call.1']
    #allocation6 [shape = 's32[1]{0}', space=sflag, size = 0x4, scoped, tag = 'scoped memory for tpu_custom_call.1']
    #allocation7 [shape = 'u8[131072]{0}', space=vmem, size = 0x20000, scoped, tag = 'input window, operand 1, single buffered']
    #allocation8 [shape = 's32[1]{0}', space=sflag, size = 0x4, scoped, tag = 'scoped memory for tpu_custom_call.1']
    #allocation9 [shape = 'u8[65536]{0}', space=vmem, size = 0x10000, scoped, tag = 'input window, operand 2, single buffered']
    #allocation10 [shape = 'u8[65536]{0}', space=vmem, size = 0x10000, scoped, tag = 'input window, operand 3, single buffered']
    #allocation11 [shape = 's32[1]{0}', space=sflag, size = 0x4, scoped, tag = 'scoped memory for tpu_custom_call.1']
    #allocation12 [shape = 'u8[32768]{0}', space=vmem, size = 0x8000, scoped, tag = 'input window, operand 4, single buffered']
    #allocation13 [shape = 'u8[32768]{0}', space=vmem, size = 0x8000, scoped, tag = 'input window, operand 5, single buffered']
    #allocation14 [shape = 's32[1]{0}', space=sflag, size = 0x4, scoped, tag = 'scoped memory for tpu_custom_call.1']
    #allocation15 [shape = 'u8[131072]{0}', space=vmem, size = 0x20000, scoped, tag = 'input window, operand 6, single buffered']
    #allocation16 [shape = 'u8[512]{0}', space=vmem, size = 0x400, scoped, tag = 'output window, operand 0, single buffered']
    %13 = vsyncpa [#allocation5], 0
    %14 = vsyncpa [#allocation8], 0
    %15 = vsyncpa [#allocation11], 0
    %16 = vsyncpa [#allocation14], 0
    %17 = vsyncpa [#allocation6], 0
    // Predicated region
    $region2: #{tpu_custom_call.1} parent=1 // pred_check
      _
    $region3: #{tpu_custom_call.1} parent=1 // pred_check_branch
      %19 = sbr.rel (0) target = $region5
    $region4: #{tpu_custom_call.1} parent=1 // pred_region
      %s21 = ssub.s32 4096, 4096
      %22 = vsyncadd [#allocation5], %s21
      %s23 = sshll.u32 [#allocation4], 4
      %s24 = int_to_ptr.vmem [resolvable:$true] %s23
      %29 = dma.hbm_to_vmem [thread:$0]  %s0, 4096, %s24, [#allocation5], 128, 128, 8
    $region5: #{tpu_custom_call.1} parent=1 // pred_fallthru
      _
    // Predicated region
    $region6: #{tpu_custom_call.1} parent=1 // pred_check
      _
    $region7: #{tpu_custom_call.1} parent=1 // pred_check_branch
      %31 = sbr.rel (0) target = $region9
    $region8: #{tpu_custom_call.1} parent=1 // pred_region
      %s33 = ssub.s32 4096, 4096
      %34 = vsyncadd [#allocation8], %s33
      %s35 = sshll.u32 [#allocation7], 4
      %s36 = int_to_ptr.vmem [resolvable:$true] %s35
      %41 = dma.hbm_to_vmem [thread:$0]  %s1, 4096, %s36, [#allocation8], 128, 128, 8
    $region9: #{tpu_custom_call.1} parent=1 // pred_fallthru
      _
    // Predicated region
    $region10: #{tpu_custom_call.1} parent=1 // pred_check
      _
    $region11: #{tpu_custom_call.1} parent=1 // pred_check_branch
      %43 = sbr.rel (0) target = $region13
    $region12: #{tpu_custom_call.1} parent=1 // pred_region
      %s45 = ssub.s32 2048, 2048
      %46 = vsyncadd [#allocation8], %s45
      %s47 = sshll.u32 [#allocation9], 4
      %s48 = int_to_ptr.vmem [resolvable:$true] %s47
      %53 = dma.hbm_to_vmem [thread:$0]  %s2, 2048, %s48, [#allocation8], 128, 128, 8
    $region13: #{tpu_custom_call.1} parent=1 // pred_fallthru
      _
    // Predicated region
    $region14: #{tpu_custom_call.1} parent=1 // pred_check
      _
    $region15: #{tpu_custom_call.1} parent=1 // pred_check_branch
      %55 = sbr.rel (0) target = $region17
    $region16: #{tpu_custom_call.1} parent=1 // pred_region
      %s57 = ssub.s32 2048, 2048
      %58 = vsyncadd [#allocation11], %s57
      %s59 = sshll.u32 [#allocation10], 4
      %s60 = int_to_ptr.vmem [resolvable:$true] %s59
      %65 = dma.hbm_to_vmem [thread:$0]  %s3, 2048, %s60, [#allocation11], 128, 128, 8
    $region17: #{tpu_custom_call.1} parent=1 // pred_fallthru
      _
    // Predicated region
    $region18: #{tpu_custom_call.1} parent=1 // pred_check
      _
    $region19: #{tpu_custom_call.1} parent=1 // pred_check_branch
      %67 = sbr.rel (0) target = $region21
    $region20: #{tpu_custom_call.1} parent=1 // pred_region
      %s69 = ssub.s32 1024, 1024
      %70 = vsyncadd [#allocation11], %s69
      %s71 = sshll.u32 [#allocation12], 4
      %s72 = int_to_ptr.vmem [resolvable:$true] %s71
      %77 = dma.hbm_to_vmem [thread:$0]  %s4, 1024, %s72, [#allocation11], 128, 128, 8
    $region21: #{tpu_custom_call.1} parent=1 // pred_fallthru
      _
    // Predicated region
    $region22: #{tpu_custom_call.1} parent=1 // pred_check
      _
    $region23: #{tpu_custom_call.1} parent=1 // pred_check_branch
      %79 = sbr.rel (0) target = $region25
    $region24: #{tpu_custom_call.1} parent=1 // pred_region
      %s81 = ssub.s32 1024, 1024
      %82 = vsyncadd [#allocation14], %s81
      %s83 = sshll.u32 [#allocation13], 4
      %s84 = int_to_ptr.vmem [resolvable:$true] %s83
      %89 = dma.hbm_to_vmem [thread:$0]  %s5, 1024, %s84, [#allocation14], 128, 128, 8
    $region25: #{tpu_custom_call.1} parent=1 // pred_fallthru
      _
    // Predicated region
    $region26: #{tpu_custom_call.1} parent=1 // pred_check
      _
    $region27: #{tpu_custom_call.1} parent=1 // pred_check_branch
      %91 = sbr.rel (0) target = $region29
    $region28: #{tpu_custom_call.1} parent=1 // pred_region
      %s93 = ssub.s32 4096, 4096
      %94 = vsyncadd [#allocation14], %s93
      %s95 = sshll.u32 [#allocation15], 4
      %s96 = int_to_ptr.vmem [resolvable:$true] %s95
      %101 = dma.hbm_to_vmem [thread:$0]  %s6, 4096, %s96, [#allocation14], 128, 128, 8
    $region29: #{tpu_custom_call.1} parent=1 // pred_fallthru
      _
    // Predicated region
    $region30: #{tpu_custom_call.1} parent=1 // pred_check
      _
    $region31: #{tpu_custom_call.1} parent=1 // pred_check_branch
      %103 = sbr.rel (0) target = $region33
    $region32: #{tpu_custom_call.1} parent=1 // pred_region
      _
    $region33: #{tpu_custom_call.1} parent=1 // pred_fallthru
      _
    // Predicated region
    $region34: #{tpu_custom_call.1} parent=1 // pred_check
      _
    $region35: #{tpu_custom_call.1} parent=1 // pred_check_branch
      %105 = sbr.rel (0) target = $region37
    $region36: #{tpu_custom_call.1} parent=1 // pred_region
      %106 = dma.done [#allocation5], 4096
    $region37: #{tpu_custom_call.1} parent=1 // pred_fallthru
      _
    // Predicated region
    $region38: #{tpu_custom_call.1} parent=1 // pred_check
      _
    $region39: #{tpu_custom_call.1} parent=1 // pred_check_branch
      %108 = sbr.rel (0) target = $region41
    $region40: #{tpu_custom_call.1} parent=1 // pred_region
      %109 = dma.done [#allocation8], 4096
    $region41: #{tpu_custom_call.1} parent=1 // pred_fallthru
      _
    // Predicated region
    $region42: #{tpu_custom_call.1} parent=1 // pred_check
      _
    $region43: #{tpu_custom_call.1} parent=1 // pred_check_branch
      %111 = sbr.rel (0) target = $region45
    $region44: #{tpu_custom_call.1} parent=1 // pred_region
      %112 = dma.done [#allocation8], 2048
    $region45: #{tpu_custom_call.1} parent=1 // pred_fallthru
      _
    // Predicated region
    $region46: #{tpu_custom_call.1} parent=1 // pred_check
      _
    $region47: #{tpu_custom_call.1} parent=1 // pred_check_branch
      %114 = sbr.rel (0) target = $region49
    $region48: #{tpu_custom_call.1} parent=1 // pred_region
      %115 = dma.done [#allocation11], 2048
    $region49: #{tpu_custom_call.1} parent=1 // pred_fallthru
      _
    // Predicated region
    $region50: #{tpu_custom_call.1} parent=1 // pred_check
      _
    $region51: #{tpu_custom_call.1} parent=1 // pred_check_branch
      %117 = sbr.rel (0) target = $region53
    $region52: #{tpu_custom_call.1} parent=1 // pred_region
      %118 = dma.done [#allocation11], 1024
    $region53: #{tpu_custom_call.1} parent=1 // pred_fallthru
      _
    // Predicated region
    $region54: #{tpu_custom_call.1} parent=1 // pred_check
      _
    $region55: #{tpu_custom_call.1} parent=1 // pred_check_branch
      %120 = sbr.rel (0) target = $region57
    $region56: #{tpu_custom_call.1} parent=1 // pred_region
      %121 = dma.done [#allocation14], 1024
    $region57: #{tpu_custom_call.1} parent=1 // pred_fallthru
      _
    // Predicated region
    $region58: #{tpu_custom_call.1} parent=1 // pred_check
      _
    $region59: #{tpu_custom_call.1} parent=1 // pred_check_branch
      %123 = sbr.rel (0) target = $region61
    $region60: #{tpu_custom_call.1} parent=1 // pred_region
      %124 = dma.done [#allocation14], 4096
    $region61: #{tpu_custom_call.1} parent=1 // pred_fallthru
      _
    %p126 = scmp.eq.s32.totalorder 0, 0
    // Predicated region
    $region62: #{tpu_custom_call.1} parent=1 // pred_check
      %p127 = pneg %p126
    $region63: #{tpu_custom_call.1} parent=1 // pred_check_branch
      %129 = sbr.rel (%p127) target = $region65
    $region64: #{tpu_custom_call.1} parent=1 // pred_region
      %v130 = vld [vmem:[#allocation4] sm:$0xff]
      %v131 = vld [vmem:[#allocation4 + $0x8] sm:$0xff]
      %v132 = vld [vmem:[#allocation4 + $0x10] sm:$0xff]
      %v133 = vld [vmem:[#allocation4 + $0x18] sm:$0xff]
      %v134 = vld [vmem:[#allocation4 + $0x20] sm:$0xff]
      %v135 = vld [vmem:[#allocation4 + $0x28] sm:$0xff]
      %v136 = vld [vmem:[#allocation4 + $0x30] sm:$0xff]
      %v137 = vld [vmem:[#allocation4 + $0x38] sm:$0xff]
      %v138 = vld [vmem:[#allocation4 + $0x40] sm:$0xff]
      %v139 = vld [vmem:[#allocation4 + $0x48] sm:$0xff]
      %v140 = vld [vmem:[#allocation4 + $0x50] sm:$0xff]
      %v141 = vld [vmem:[#allocation4 + $0x58] sm:$0xff]
      %v142 = vld [vmem:[#allocation4 + $0x60] sm:$0xff]
      %v143 = vld [vmem:[#allocation4 + $0x68] sm:$0xff]
      %v144 = vld [vmem:[#allocation4 + $0x70] sm:$0xff]
      %v145 = vld [vmem:[#allocation4 + $0x78] sm:$0xff]
      %v146 = vld [vmem:[#allocation4 + $0x80] sm:$0xff]
      %v147 = vld [vmem:[#allocation4 + $0x88] sm:$0xff]
      %v148 = vld [vmem:[#allocation4 + $0x90] sm:$0xff]
      %v149 = vld [vmem:[#allocation4 + $0x98] sm:$0xff]
      %v150 = vld [vmem:[#allocation4 + $0xa0] sm:$0xff]
      %v151 = vld [vmem:[#allocation4 + $0xa8] sm:$0xff]
      %v152 = vld [vmem:[#allocation4 + $0xb0] sm:$0xff]
      %v153 = vld [vmem:[#allocation4 + $0xb8] sm:$0xff]
      %v154 = vld [vmem:[#allocation4 + $0xc0] sm:$0xff]
      %v155 = vld [vmem:[#allocation4 + $0xc8] sm:$0xff]
      %v156 = vld [vmem:[#allocation4 + $0xd0] sm:$0xff]
      %v157 = vld [vmem:[#allocation4 + $0xd8] sm:$0xff]
      %v158 = vld [vmem:[#allocation4 + $0xe0] sm:$0xff]
      %v159 = vld [vmem:[#allocation4 + $0xe8] sm:$0xff]
      %v160 = vld [vmem:[#allocation4 + $0xf0] sm:$0xff]
      %v161 = vld [vmem:[#allocation4 + $0xf8] sm:$0xff]
      %v162 = vmul.f32 %v130, %v130
      %v163 = vmul.f32 %v131, %v131
      %v164 = vmul.f32 %v132, %v132
      %v165 = vmul.f32 %v133, %v133
      %v166 = vmul.f32 %v134, %v134
      %v167 = vmul.f32 %v135, %v135
      %v168 = vmul.f32 %v136, %v136
      %v169 = vmul.f32 %v137, %v137
      %v170 = vmul.f32 %v138, %v138
      %v171 = vmul.f32 %v139, %v139
      %v172 = vmul.f32 %v140, %v140
      %v173 = vmul.f32 %v141, %v141
      %v174 = vmul.f32 %v142, %v142
      %v175 = vmul.f32 %v143, %v143
      %v176 = vmul.f32 %v144, %v144
      %v177 = vmul.f32 %v145, %v145
      %v178 = vmul.f32 %v146, %v146
      %v179 = vmul.f32 %v147, %v147
      %v180 = vmul.f32 %v148, %v148
      %v181 = vmul.f32 %v149, %v149
      %v182 = vmul.f32 %v150, %v150
      %v183 = vmul.f32 %v151, %v151
      %v184 = vmul.f32 %v152, %v152
      %v185 = vmul.f32 %v153, %v153
      %v186 = vmul.f32 %v154, %v154
      %v187 = vmul.f32 %v155, %v155
      %v188 = vmul.f32 %v156, %v156
      %v189 = vmul.f32 %v157, %v157
      %v190 = vmul.f32 %v158, %v158
      %v191 = vmul.f32 %v159, %v159
      %v192 = vmul.f32 %v160, %v160
      %v193 = vmul.f32 %v161, %v161
      %194 = vadd.xlane.f32.xlu0 %v162
      %v195 = vpop.xlane.xlu0 %194
      %196 = vadd.xlane.f32.xlu0 %v163
      %v197 = vpop.xlane.xlu0 %196
      %198 = vadd.xlane.f32.xlu0 %v164
      %v199 = vpop.xlane.xlu0 %198
      %200 = vadd.xlane.f32.xlu0 %v165
      %v201 = vpop.xlane.xlu0 %200
      %202 = vadd.xlane.f32.xlu0 %v166
      %v203 = vpop.xlane.xlu0 %202
      %204 = vadd.xlane.f32.xlu0 %v167
      %v205 = vpop.xlane.xlu0 %204
      %206 = vadd.xlane.f32.xlu0 %v168
      %v207 = vpop.xlane.xlu0 %206
      %208 = vadd.xlane.f32.xlu0 %v169
      %v209 = vpop.xlane.xlu0 %208
      %210 = vadd.xlane.f32.xlu0 %v170
      %v211 = vpop.xlane.xlu0 %210
      %212 = vadd.xlane.f32.xlu0 %v171
      %v213 = vpop.xlane.xlu0 %212
      %214 = vadd.xlane.f32.xlu0 %v172
      %v215 = vpop.xlane.xlu0 %214
      %216 = vadd.xlane.f32.xlu0 %v173
      %v217 = vpop.xlane.xlu0 %216
      %218 = vadd.xlane.f32.xlu0 %v174
      %v219 = vpop.xlane.xlu0 %218
      %220 = vadd.xlane.f32.xlu0 %v175
      %v221 = vpop.xlane.xlu0 %220
      %222 = vadd.xlane.f32.xlu0 %v176
      %v223 = vpop.xlane.xlu0 %222
      %224 = vadd.xlane.f32.xlu0 %v177
      %v225 = vpop.xlane.xlu0 %224
      %226 = vadd.xlane.f32.xlu0 %v178
      %v227 = vpop.xlane.xlu0 %226
      %228 = vadd.xlane.f32.xlu0 %v179
      %v229 = vpop.xlane.xlu0 %228
      %230 = vadd.xlane.f32.xlu0 %v180
      %v231 = vpop.xlane.xlu0 %230
      %232 = vadd.xlane.f32.xlu0 %v181
      %v233 = vpop.xlane.xlu0 %232
      %234 = vadd.xlane.f32.xlu0 %v182
      %v235 = vpop.xlane.xlu0 %234
      %236 = vadd.xlane.f32.xlu0 %v183
      %v237 = vpop.xlane.xlu0 %236
      %238 = vadd.xlane.f32.xlu0 %v184
      %v239 = vpop.xlane.xlu0 %238
      %240 = vadd.xlane.f32.xlu0 %v185
      %v241 = vpop.xlane.xlu0 %240
      %242 = vadd.xlane.f32.xlu0 %v186
      %v243 = vpop.xlane.xlu0 %242
      %244 = vadd.xlane.f32.xlu0 %v187
      %v245 = vpop.xlane.xlu0 %244
      %246 = vadd.xlane.f32.xlu0 %v188
      %v247 = vpop.xlane.xlu0 %246
      %248 = vadd.xlane.f32.xlu0 %v189
      %v249 = vpop.xlane.xlu0 %248
      %250 = vadd.xlane.f32.xlu0 %v190
      %v251 = vpop.xlane.xlu0 %250
      %252 = vadd.xlane.f32.xlu0 %v191
      %v253 = vpop.xlane.xlu0 %252
      %254 = vadd.xlane.f32.xlu0 %v192
      %v255 = vpop.xlane.xlu0 %254
      %256 = vadd.xlane.f32.xlu0 %v193
      %v257 = vpop.xlane.xlu0 %256
      %v258 = vadd.f32 %v195, 1e-12
      %v259 = vadd.f32 %v197, 1e-12
      %v260 = vadd.f32 %v199, 1e-12
      %v261 = vadd.f32 %v201, 1e-12
      %v262 = vadd.f32 %v203, 1e-12
      %v263 = vadd.f32 %v205, 1e-12
      %v264 = vadd.f32 %v207, 1e-12
      %v265 = vadd.f32 %v209, 1e-12
      %v266 = vadd.f32 %v211, 1e-12
      %v267 = vadd.f32 %v213, 1e-12
      %v268 = vadd.f32 %v215, 1e-12
      %v269 = vadd.f32 %v217, 1e-12
      %v270 = vadd.f32 %v219, 1e-12
      %v271 = vadd.f32 %v221, 1e-12
      %v272 = vadd.f32 %v223, 1e-12
      %v273 = vadd.f32 %v225, 1e-12
      %v274 = vadd.f32 %v227, 1e-12
      %v275 = vadd.f32 %v229, 1e-12
      %v276 = vadd.f32 %v231, 1e-12
      %v277 = vadd.f32 %v233, 1e-12
      %v278 = vadd.f32 %v235, 1e-12
      %v279 = vadd.f32 %v237, 1e-12
      %v280 = vadd.f32 %v239, 1e-12
      %v281 = vadd.f32 %v241, 1e-12
      %v282 = vadd.f32 %v243, 1e-12
      %v283 = vadd.f32 %v245, 1e-12
      %v284 = vadd.f32 %v247, 1e-12
      %v285 = vadd.f32 %v249, 1e-12
      %v286 = vadd.f32 %v251, 1e-12
      %v287 = vadd.f32 %v253, 1e-12
      %v288 = vadd.f32 %v255, 1e-12
      %v289 = vadd.f32 %v257, 1e-12
      %v290 = vrsqrt.pop %v258
      %v291 = vrsqrt.pop %v259
      %v292 = vrsqrt.pop %v260
      %v293 = vrsqrt.pop %v261
      %v294 = vrsqrt.pop %v262
      %v295 = vrsqrt.pop %v263
      %v296 = vrsqrt.pop %v264
      %v297 = vrsqrt.pop %v265
      %v298 = vrsqrt.pop %v266
      %v299 = vrsqrt.pop %v267
      %v300 = vrsqrt.pop %v268
      %v301 = vrsqrt.pop %v269
      %v302 = vrsqrt.pop %v270
      %v303 = vrsqrt.pop %v271
      %v304 = vrsqrt.pop %v272
      %v305 = vrsqrt.pop %v273
      %v306 = vrsqrt.pop %v274
      %v307 = vrsqrt.pop %v275
      %v308 = vrsqrt.pop %v276
      %v309 = vrsqrt.pop %v277
      %v310 = vrsqrt.pop %v278
      %v311 = vrsqrt.pop %v279
      %v312 = vrsqrt.pop %v280
      %v313 = vrsqrt.pop %v281
      %v314 = vrsqrt.pop %v282
      %v315 = vrsqrt.pop %v283
      %v316 = vrsqrt.pop %v284
      %v317 = vrsqrt.pop %v285
      %v318 = vrsqrt.pop %v286
      %v319 = vrsqrt.pop %v287
      %v320 = vrsqrt.pop %v288
      %v321 = vrsqrt.pop %v289
      %v322 = vmul.f32 %v130, %v290
      %v323 = vmul.f32 %v131, %v291
      %v324 = vmul.f32 %v132, %v292
      %v325 = vmul.f32 %v133, %v293
      %v326 = vmul.f32 %v134, %v294
      %v327 = vmul.f32 %v135, %v295
      %v328 = vmul.f32 %v136, %v296
      %v329 = vmul.f32 %v137, %v297
      %v330 = vmul.f32 %v138, %v298
      %v331 = vmul.f32 %v139, %v299
      %v332 = vmul.f32 %v140, %v300
      %v333 = vmul.f32 %v141, %v301
      %v334 = vmul.f32 %v142, %v302
      %v335 = vmul.f32 %v143, %v303
      %v336 = vmul.f32 %v144, %v304
      %v337 = vmul.f32 %v145, %v305
      %v338 = vmul.f32 %v146, %v306
      %v339 = vmul.f32 %v147, %v307
      %v340 = vmul.f32 %v148, %v308
      %v341 = vmul.f32 %v149, %v309
      %v342 = vmul.f32 %v150, %v310
      %v343 = vmul.f32 %v151, %v311
      %v344 = vmul.f32 %v152, %v312
      %v345 = vmul.f32 %v153, %v313
      %v346 = vmul.f32 %v154, %v314
      %v347 = vmul.f32 %v155, %v315
      %v348 = vmul.f32 %v156, %v316
      %v349 = vmul.f32 %v157, %v317
      %v350 = vmul.f32 %v158, %v318
      %v351 = vmul.f32 %v159, %v319
      %v352 = vmul.f32 %v160, %v320
      %v353 = vmul.f32 %v161, %v321
      %v354 = vpack.c.bf16 %v323, %v322
      %v355 = vpack.c.bf16 %v325, %v324
      %v356 = vpack.c.bf16 %v327, %v326
      %v357 = vpack.c.bf16 %v329, %v328
      %v358 = vpack.c.bf16 %v331, %v330
      %v359 = vpack.c.bf16 %v333, %v332
      %v360 = vpack.c.bf16 %v335, %v334
      %v361 = vpack.c.bf16 %v337, %v336
      %v362 = vpack.c.bf16 %v339, %v338
      %v363 = vpack.c.bf16 %v341, %v340
      %v364 = vpack.c.bf16 %v343, %v342
      %v365 = vpack.c.bf16 %v345, %v344
      %v366 = vpack.c.bf16 %v347, %v346
      %v367 = vpack.c.bf16 %v349, %v348
      %v368 = vpack.c.bf16 %v351, %v350
      %v369 = vpack.c.bf16 %v353, %v352
      %370 = vst [vmem:[#allocation2] sm:$0xff] %v354
      %371 = vst [vmem:[#allocation2 + $0x8] sm:$0xff] %v355
      %372 = vst [vmem:[#allocation2 + $0x10] sm:$0xff] %v356
      %373 = vst [vmem:[#allocation2 + $0x18] sm:$0xff] %v357
      %374 = vst [vmem:[#allocation2 + $0x20] sm:$0xff] %v358
      %375 = vst [vmem:[#allocation2 + $0x28] sm:$0xff] %v359
      %376 = vst [vmem:[#allocation2 + $0x30] sm:$0xff] %v360
      %377 = vst [vmem:[#allocation2 + $0x38] sm:$0xff] %v361
      %378 = vst [vmem:[#allocation2 + $0x40] sm:$0xff] %v362
      %379 = vst [vmem:[#allocation2 + $0x48] sm:$0xff] %v363
      %380 = vst [vmem:[#allocation2 + $0x50] sm:$0xff] %v364
      %381 = vst [vmem:[#allocation2 + $0x58] sm:$0xff] %v365
      %382 = vst [vmem:[#allocation2 + $0x60] sm:$0xff] %v366
      %383 = vst [vmem:[#allocation2 + $0x68] sm:$0xff] %v367
      %384 = vst [vmem:[#allocation2 + $0x70] sm:$0xff] %v368
      %385 = vst [vmem:[#allocation2 + $0x78] sm:$0xff] %v369
      %vm386 = vcmask 7168
      %387 = vst.msk [vmem:[#allocation3] sm:$0xff] %vm386, -inf
      %388 = vst.msk [vmem:[#allocation3 + $0x8] sm:$0xff] %vm386, -inf
      %389 = vst.msk [vmem:[#allocation3 + $0x10] sm:$0xff] %vm386, -inf
      %390 = vst.msk [vmem:[#allocation3 + $0x18] sm:$0xff] %vm386, -inf
      %391 = vst.msk [vmem:[#allocation3 + $0x20] sm:$0xff] %vm386, -inf
      %392 = vst.msk [vmem:[#allocation3 + $0x28] sm:$0xff] %vm386, -inf
      %393 = vst.msk [vmem:[#allocation3 + $0x30] sm:$0xff] %vm386, -inf
      %394 = vst.msk [vmem:[#allocation3 + $0x38] sm:$0xff] %vm386, -inf
      %395 = vst.msk [vmem:[#allocation3 + $0x40] sm:$0xff] %vm386, -inf
      %396 = vst.msk [vmem:[#allocation3 + $0x48] sm:$0xff] %vm386, -inf
      %397 = vst.msk [vmem:[#allocation3 + $0x50] sm:$0xff] %vm386, -inf
      %398 = vst.msk [vmem:[#allocation3 + $0x58] sm:$0xff] %vm386, -inf
      %399 = vst.msk [vmem:[#allocation3 + $0x60] sm:$0xff] %vm386, -inf
      %400 = vst.msk [vmem:[#allocation3 + $0x68] sm:$0xff] %vm386, -inf
      %401 = vst.msk [vmem:[#allocation3 + $0x70] sm:$0xff] %vm386, -inf
      %402 = vst.msk [vmem:[#allocation3 + $0x78] sm:$0xff] %vm386, -inf
      %403 = vst.msk [vmem:[#allocation3 + $0x80] sm:$0xff] %vm386, -inf
      %404 = vst.msk [vmem:[#allocation3 + $0x88] sm:$0xff] %vm386, -inf
      %405 = vst.msk [vmem:[#allocation3 + $0x90] sm:$0xff] %vm386, -inf
      %406 = vst.msk [vmem:[#allocation3 + $0x98] sm:$0xff] %vm386, -inf
      %407 = vst.msk [vmem:[#allocation3 + $0xa0] sm:$0xff] %vm386, -inf
      %408 = vst.msk [vmem:[#allocation3 + $0xa8] sm:$0xff] %vm386, -inf
      %409 = vst.msk [vmem:[#allocation3 + $0xb0] sm:$0xff] %vm386, -inf
      %410 = vst.msk [vmem:[#allocation3 + $0xb8] sm:$0xff] %vm386, -inf
      %411 = vst.msk [vmem:[#allocation3 + $0xc0] sm:$0xff] %vm386, -inf
      %412 = vst.msk [vmem:[#allocation3 + $0xc8] sm:$0xff] %vm386, -inf
      %413 = vst.msk [vmem:[#allocation3 + $0xd0] sm:$0xff] %vm386, -inf
      %414 = vst.msk [vmem:[#allocation3 + $0xd8] sm:$0xff] %vm386, -inf
      %415 = vst.msk [vmem:[#allocation3 + $0xe0] sm:$0xff] %vm386, -inf
      %416 = vst.msk [vmem:[#allocation3 + $0xe8] sm:$0xff] %vm386, -inf
      %417 = vst.msk [vmem:[#allocation3 + $0xf0] sm:$0xff] %vm386, -inf
      %418 = vst.msk [vmem:[#allocation3 + $0xf8] sm:$0xff] %vm386, -inf
    $region65: #{tpu_custom_call.1} parent=1 // pred_fallthru
      _
    %v419 = vld [vmem:[#allocation7] sm:$0xff]
    %v420 = vld [vmem:[#allocation7 + $0x8] sm:$0xff]
    %v421 = vld [vmem:[#allocation7 + $0x10] sm:$0xff]
    %v422 = vld [vmem:[#allocation7 + $0x18] sm:$0xff]
    %v423 = vld [vmem:[#allocation7 + $0x20] sm:$0xff]
    %v424 = vld [vmem:[#allocation7 + $0x28] sm:$0xff]
    %v425 = vld [vmem:[#allocation7 + $0x30] sm:$0xff]
    %v426 = vld [vmem:[#allocation7 + $0x38] sm:$0xff]
    %v427 = vld [vmem:[#allocation7 + $0x40] sm:$0xff]
    %v428 = vld [vmem:[#allocation7 + $0x48] sm:$0xff]
    %v429 = vld [vmem:[#allocation7 + $0x50] sm:$0xff]
    %v430 = vld [vmem:[#allocation7 + $0x58] sm:$0xff]
    %v431 = vld [vmem:[#allocation7 + $0x60] sm:$0xff]
    %v432 = vld [vmem:[#allocation7 + $0x68] sm:$0xff]
    %v433 = vld [vmem:[#allocation7 + $0x70] sm:$0xff]
    %v434 = vld [vmem:[#allocation7 + $0x78] sm:$0xff]
    %v435 = vld [vmem:[#allocation7 + $0x80] sm:$0xff]
    %v436 = vld [vmem:[#allocation7 + $0x88] sm:$0xff]
    %v437 = vld [vmem:[#allocation7 + $0x90] sm:$0xff]
    %v438 = vld [vmem:[#allocation7 + $0x98] sm:$0xff]
    %v439 = vld [vmem:[#allocation7 + $0xa0] sm:$0xff]
    %v440 = vld [vmem:[#allocation7 + $0xa8] sm:$0xff]
    %v441 = vld [vmem:[#allocation7 + $0xb0] sm:$0xff]
    %v442 = vld [vmem:[#allocation7 + $0xb8] sm:$0xff]
    %v443 = vld [vmem:[#allocation7 + $0xc0] sm:$0xff]
    %v444 = vld [vmem:[#allocation7 + $0xc8] sm:$0xff]
    %v445 = vld [vmem:[#allocation7 + $0xd0] sm:$0xff]
    %v446 = vld [vmem:[#allocation7 + $0xd8] sm:$0xff]
    %v447 = vld [vmem:[#allocation7 + $0xe0] sm:$0xff]
    %v448 = vld [vmem:[#allocation7 + $0xe8] sm:$0xff]
    %v449 = vld [vmem:[#allocation7 + $0xf0] sm:$0xff]
    %v450 = vld [vmem:[#allocation7 + $0xf8] sm:$0xff]
    %v451 = vmul.f32 %v419, %v419
    %v452 = vmul.f32 %v420, %v420
    %v453 = vmul.f32 %v421, %v421
    %v454 = vmul.f32 %v422, %v422
    %v455 = vmul.f32 %v423, %v423
    %v456 = vmul.f32 %v424, %v424
    %v457 = vmul.f32 %v425, %v425
    %v458 = vmul.f32 %v426, %v426
    %v459 = vmul.f32 %v427, %v427
    %v460 = vmul.f32 %v428, %v428
    %v461 = vmul.f32 %v429, %v429
    %v462 = vmul.f32 %v430, %v430
    %v463 = vmul.f32 %v431, %v431
    %v464 = vmul.f32 %v432, %v432
    %v465 = vmul.f32 %v433, %v433
    %v466 = vmul.f32 %v434, %v434
    %v467 = vmul.f32 %v435, %v435
    %v468 = vmul.f32 %v436, %v436
    %v469 = vmul.f32 %v437, %v437
    %v470 = vmul.f32 %v438, %v438
    %v471 = vmul.f32 %v439, %v439
    %v472 = vmul.f32 %v440, %v440
    %v473 = vmul.f32 %v441, %v441
    %v474 = vmul.f32 %v442, %v442
    %v475 = vmul.f32 %v443, %v443
    %v476 = vmul.f32 %v444, %v444
    %v477 = vmul.f32 %v445, %v445
    %v478 = vmul.f32 %v446, %v446
    %v479 = vmul.f32 %v447, %v447
    %v480 = vmul.f32 %v448, %v448
    %v481 = vmul.f32 %v449, %v449
    %v482 = vmul.f32 %v450, %v450
    %483 = vadd.xlane.f32.xlu0 %v451
    %v484 = vpop.xlane.xlu0 %483
    %485 = vadd.xlane.f32.xlu0 %v452
    %v486 = vpop.xlane.xlu0 %485
    %487 = vadd.xlane.f32.xlu0 %v453
    %v488 = vpop.xlane.xlu0 %487
    %489 = vadd.xlane.f32.xlu0 %v454
    %v490 = vpop.xlane.xlu0 %489
    %491 = vadd.xlane.f32.xlu0 %v455
    %v492 = vpop.xlane.xlu0 %491
    %493 = vadd.xlane.f32.xlu0 %v456
    %v494 = vpop.xlane.xlu0 %493
    %495 = vadd.xlane.f32.xlu0 %v457
    %v496 = vpop.xlane.xlu0 %495
    %497 = vadd.xlane.f32.xlu0 %v458
    %v498 = vpop.xlane.xlu0 %497
    %499 = vadd.xlane.f32.xlu0 %v459
    %v500 = vpop.xlane.xlu0 %499
    %501 = vadd.xlane.f32.xlu0 %v460
    %v502 = vpop.xlane.xlu0 %501
    %503 = vadd.xlane.f32.xlu0 %v461
    %v504 = vpop.xlane.xlu0 %503
    %505 = vadd.xlane.f32.xlu0 %v462
    %v506 = vpop.xlane.xlu0 %505
    %507 = vadd.xlane.f32.xlu0 %v463
    %v508 = vpop.xlane.xlu0 %507
    %509 = vadd.xlane.f32.xlu0 %v464
    %v510 = vpop.xlane.xlu0 %509
    %511 = vadd.xlane.f32.xlu0 %v465
    %v512 = vpop.xlane.xlu0 %511
    %513 = vadd.xlane.f32.xlu0 %v466
    %v514 = vpop.xlane.xlu0 %513
    %515 = vadd.xlane.f32.xlu0 %v467
    %v516 = vpop.xlane.xlu0 %515
    %517 = vadd.xlane.f32.xlu0 %v468
    %v518 = vpop.xlane.xlu0 %517
    %519 = vadd.xlane.f32.xlu0 %v469
    %v520 = vpop.xlane.xlu0 %519
    %521 = vadd.xlane.f32.xlu0 %v470
    %v522 = vpop.xlane.xlu0 %521
    %523 = vadd.xlane.f32.xlu0 %v471
    %v524 = vpop.xlane.xlu0 %523
    %525 = vadd.xlane.f32.xlu0 %v472
    %v526 = vpop.xlane.xlu0 %525
    %527 = vadd.xlane.f32.xlu0 %v473
    %v528 = vpop.xlane.xlu0 %527
    %529 = vadd.xlane.f32.xlu0 %v474
    %v530 = vpop.xlane.xlu0 %529
    %531 = vadd.xlane.f32.xlu0 %v475
    %v532 = vpop.xlane.xlu0 %531
    %533 = vadd.xlane.f32.xlu0 %v476
    %v534 = vpop.xlane.xlu0 %533
    %535 = vadd.xlane.f32.xlu0 %v477
    %v536 = vpop.xlane.xlu0 %535
    %537 = vadd.xlane.f32.xlu0 %v478
    %v538 = vpop.xlane.xlu0 %537
    %539 = vadd.xlane.f32.xlu0 %v479
    %v540 = vpop.xlane.xlu0 %539
    %541 = vadd.xlane.f32.xlu0 %v480
    %v542 = vpop.xlane.xlu0 %541
    %543 = vadd.xlane.f32.xlu0 %v481
    %v544 = vpop.xlane.xlu0 %543
    %545 = vadd.xlane.f32.xlu0 %v482
    %v546 = vpop.xlane.xlu0 %545
    %v547 = vadd.f32 %v484, 1e-12
    %v548 = vadd.f32 %v486, 1e-12
    %v549 = vadd.f32 %v488, 1e-12
    %v550 = vadd.f32 %v490, 1e-12
    %v551 = vadd.f32 %v492, 1e-12
    %v552 = vadd.f32 %v494, 1e-12
    %v553 = vadd.f32 %v496, 1e-12
    %v554 = vadd.f32 %v498, 1e-12
    %v555 = vadd.f32 %v500, 1e-12
    %v556 = vadd.f32 %v502, 1e-12
    %v557 = vadd.f32 %v504, 1e-12
    %v558 = vadd.f32 %v506, 1e-12
    %v559 = vadd.f32 %v508, 1e-12
    %v560 = vadd.f32 %v510, 1e-12
    %v561 = vadd.f32 %v512, 1e-12
    %v562 = vadd.f32 %v514, 1e-12
    %v563 = vadd.f32 %v516, 1e-12
    %v564 = vadd.f32 %v518, 1e-12
    %v565 = vadd.f32 %v520, 1e-12
    %v566 = vadd.f32 %v522, 1e-12
    %v567 = vadd.f32 %v524, 1e-12
    %v568 = vadd.f32 %v526, 1e-12
    %v569 = vadd.f32 %v528, 1e-12
    %v570 = vadd.f32 %v530, 1e-12
    %v571 = vadd.f32 %v532, 1e-12
    %v572 = vadd.f32 %v534, 1e-12
    %v573 = vadd.f32 %v536, 1e-12
    %v574 = vadd.f32 %v538, 1e-12
    %v575 = vadd.f32 %v540, 1e-12
    %v576 = vadd.f32 %v542, 1e-12
    %v577 = vadd.f32 %v544, 1e-12
    %v578 = vadd.f32 %v546, 1e-12
    %v579 = vrsqrt.pop %v547
    %v580 = vrsqrt.pop %v548
    %v581 = vrsqrt.pop %v549
    %v582 = vrsqrt.pop %v550
    %v583 = vrsqrt.pop %v551
    %v584 = vrsqrt.pop %v552
    %v585 = vrsqrt.pop %v553
    %v586 = vrsqrt.pop %v554
    %v587 = vrsqrt.pop %v555
    %v588 = vrsqrt.pop %v556
    %v589 = vrsqrt.pop %v557
    %v590 = vrsqrt.pop %v558
    %v591 = vrsqrt.pop %v559
    %v592 = vrsqrt.pop %v560
    %v593 = vrsqrt.pop %v561
    %v594 = vrsqrt.pop %v562
    %v595 = vrsqrt.pop %v563
    %v596 = vrsqrt.pop %v564
    %v597 = vrsqrt.pop %v565
    %v598 = vrsqrt.pop %v566
    %v599 = vrsqrt.pop %v567
    %v600 = vrsqrt.pop %v568
    %v601 = vrsqrt.pop %v569
    %v602 = vrsqrt.pop %v570
    %v603 = vrsqrt.pop %v571
    %v604 = vrsqrt.pop %v572
    %v605 = vrsqrt.pop %v573
    %v606 = vrsqrt.pop %v574
    %v607 = vrsqrt.pop %v575
    %v608 = vrsqrt.pop %v576
    %v609 = vrsqrt.pop %v577
    %v610 = vrsqrt.pop %v578
    %v611 = vmul.f32 %v419, %v579
    %v612 = vmul.f32 %v420, %v580
    %v613 = vmul.f32 %v421, %v581
    %v614 = vmul.f32 %v422, %v582
    %v615 = vmul.f32 %v423, %v583
    %v616 = vmul.f32 %v424, %v584
    %v617 = vmul.f32 %v425, %v585
    %v618 = vmul.f32 %v426, %v586
    %v619 = vmul.f32 %v427, %v587
    %v620 = vmul.f32 %v428, %v588
    %v621 = vmul.f32 %v429, %v589
    %v622 = vmul.f32 %v430, %v590
    %v623 = vmul.f32 %v431, %v591
    %v624 = vmul.f32 %v432, %v592
    %v625 = vmul.f32 %v433, %v593
    %v626 = vmul.f32 %v434, %v594
    %v627 = vmul.f32 %v435, %v595
    %v628 = vmul.f32 %v436, %v596
    %v629 = vmul.f32 %v437, %v597
    %v630 = vmul.f32 %v438, %v598
    %v631 = vmul.f32 %v439, %v599
    %v632 = vmul.f32 %v440, %v600
    %v633 = vmul.f32 %v441, %v601
    %v634 = vmul.f32 %v442, %v602
    %v635 = vmul.f32 %v443, %v603
    %v636 = vmul.f32 %v444, %v604
    %v637 = vmul.f32 %v445, %v605
    %v638 = vmul.f32 %v446, %v606
    %v639 = vmul.f32 %v447, %v607
    %v640 = vmul.f32 %v448, %v608
    %v641 = vmul.f32 %v449, %v609
    %v642 = vmul.f32 %v450, %v610
    %v643 = vpack.c.bf16 %v612, %v611
    %v644 = vpack.c.bf16 %v614, %v613
    %v645 = vpack.c.bf16 %v616, %v615
    %v646 = vpack.c.bf16 %v618, %v617
    %v647 = vpack.c.bf16 %v620, %v619
    %v648 = vpack.c.bf16 %v622, %v621
    %v649 = vpack.c.bf16 %v624, %v623
    %v650 = vpack.c.bf16 %v626, %v625
    %v651 = vpack.c.bf16 %v628, %v627
    %v652 = vpack.c.bf16 %v630, %v629
    %v653 = vpack.c.bf16 %v632, %v631
    %v654 = vpack.c.bf16 %v634, %v633
    %v655 = vpack.c.bf16 %v636, %v635
    %v656 = vpack.c.bf16 %v638, %v637
    %v657 = vpack.c.bf16 %v640, %v639
    %v658 = vpack.c.bf16 %v642, %v641
    %v659 = vld [vmem:[#allocation2] sm:$0xff]
    %v660 = vld [vmem:[#allocation2 + $0x8] sm:$0xff]
    %v661 = vld [vmem:[#allocation2 + $0x10] sm:$0xff]
    %v662 = vld [vmem:[#allocation2 + $0x18] sm:$0xff]
    %v663 = vld [vmem:[#allocation2 + $0x20] sm:$0xff]
    %v664 = vld [vmem:[#allocation2 + $0x28] sm:$0xff]
    %v665 = vld [vmem:[#allocation2 + $0x30] sm:$0xff]
    %v666 = vld [vmem:[#allocation2 + $0x38] sm:$0xff]
    %v667 = vld [vmem:[#allocation2 + $0x40] sm:$0xff]
    %v668 = vld [vmem:[#allocation2 + $0x48] sm:$0xff]
    %v669 = vld [vmem:[#allocation2 + $0x50] sm:$0xff]
    %v670 = vld [vmem:[#allocation2 + $0x58] sm:$0xff]
    %v671 = vld [vmem:[#allocation2 + $0x60] sm:$0xff]
    %v672 = vld [vmem:[#allocation2 + $0x68] sm:$0xff]
    %v673 = vld [vmem:[#allocation2 + $0x70] sm:$0xff]
    %v674 = vld [vmem:[#allocation2 + $0x78] sm:$0xff]
    %675 = vmatprep.subr.bf16.mxu0 0
    %676 = vmatpush1.bf16.xpose.msra.mxu0 %v643
    %677 = vmatprep.subr.bf16.mxu0 0
    %678 = vmatpush1.bf16.xpose.msra.mxu0 %v644
    %679 = vmatprep.subr.bf16.mxu0 0
    %680 = vmatpush1.bf16.xpose.msra.mxu0 %v645
    %681 = vmatprep.subr.bf16.mxu0 0
    %682 = vmatpush1.bf16.xpose.msra.mxu0 %v646
    %683 = vmatprep.subr.bf16.mxu0 0
    %684 = vmatpush1.bf16.xpose.msra.mxu0 %v647
    %685 = vmatprep.subr.bf16.mxu0 0
    %686 = vmatpush1.bf16.xpose.msra.mxu0 %v648
    %687 = vmatprep.subr.bf16.mxu0 0
    %688 = vmatpush1.bf16.xpose.msra.mxu0 %v649
    %689 = vmatprep.subr.bf16.mxu0 0
    %690 = vmatpush1.bf16.xpose.msra.mxu0 %v650
    %691 = vmatprep.subr.bf16.mxu0 0
    %692 = vmatpush1.bf16.xpose.msra.mxu0 %v651
    %693 = vmatprep.subr.bf16.mxu0 0
    %694 = vmatpush1.bf16.xpose.msra.mxu0 %v652
    %695 = vmatprep.subr.bf16.mxu0 0
    %696 = vmatpush1.bf16.xpose.msra.mxu0 %v653
    %697 = vmatprep.subr.bf16.mxu0 0
    %698 = vmatpush1.bf16.xpose.msra.mxu0 %v654
    %699 = vmatprep.subr.bf16.mxu0 0
    %700 = vmatpush1.bf16.xpose.msra.mxu0 %v655
    %701 = vmatprep.subr.bf16.mxu0 0
    %702 = vmatpush1.bf16.xpose.msra.mxu0 %v656
    %703 = vmatprep.subr.bf16.mxu0 0
    %704 = vmatpush1.bf16.xpose.msra.mxu0 %v657
    %705 = vmatprep.subr.bf16.mxu0 0
    %706 = vmatpush1.bf16.xpose.msra.mxu0 %v658
    %707 = vmatprep.mubr.bf16.mxu0 0
    %708 = vmatmul.mubr.bf16.gmra.mrb[0].mxu0 %v659
    %v709 = vpop.f32.mrb[0].mxu0
    %v710 = vadd.f32 0.0, %v709
    %v711 = vpop.f32.mrb[0].mxu0
    %v712 = vadd.f32 0.0, %v711
    %v713 = vpop.f32.mrb[0].mxu0
    %v714 = vadd.f32 0.0, %v713
    %v715 = vpop.f32.mrb[0].mxu0
    %v716 = vadd.f32 0.0, %v715
    %717 = vmatprep.mubr.bf16.mxu0 0
    %718 = vmatmul.mubr.bf16.gmra.mrb[0].mxu0 %v660
    %v719 = vpop.f32.mrb[0].mxu0
    %v720 = vadd.f32 0.0, %v719
    %v721 = vpop.f32.mrb[0].mxu0
    %v722 = vadd.f32 0.0, %v721
    %v723 = vpop.f32.mrb[0].mxu0
    %v724 = vadd.f32 0.0, %v723
    %v725 = vpop.f32.mrb[0].mxu0
    %v726 = vadd.f32 0.0, %v725
    %727 = vmatprep.mubr.bf16.mxu0 0
    %728 = vmatmul.mubr.bf16.gmra.mrb[0].mxu0 %v661
    %v729 = vpop.f32.mrb[0].mxu0
    %v730 = vadd.f32 0.0, %v729
    %v731 = vpop.f32.mrb[0].mxu0
    %v732 = vadd.f32 0.0, %v731
    %v733 = vpop.f32.mrb[0].mxu0
    %v734 = vadd.f32 0.0, %v733
    %v735 = vpop.f32.mrb[0].mxu0
    %v736 = vadd.f32 0.0, %v735
    %737 = vmatprep.mubr.bf16.mxu0 0
    %738 = vmatmul.mubr.bf16.gmra.mrb[0].mxu0 %v662
    %v739 = vpop.f32.mrb[0].mxu0
    %v740 = vadd.f32 0.0, %v739
    %v741 = vpop.f32.mrb[0].mxu0
    %v742 = vadd.f32 0.0, %v741
    %v743 = vpop.f32.mrb[0].mxu0
    %v744 = vadd.f32 0.0, %v743
    %v745 = vpop.f32.mrb[0].mxu0
    %v746 = vadd.f32 0.0, %v745
    %747 = vmatprep.mubr.bf16.mxu0 0
    %748 = vmatmul.mubr.bf16.gmra.mrb[0].mxu0 %v663
    %v749 = vpop.f32.mrb[0].mxu0
    %v750 = vadd.f32 0.0, %v749
    %v751 = vpop.f32.mrb[0].mxu0
    %v752 = vadd.f32 0.0, %v751
    %v753 = vpop.f32.mrb[0].mxu0
    %v754 = vadd.f32 0.0, %v753
    %v755 = vpop.f32.mrb[0].mxu0
    %v756 = vadd.f32 0.0, %v755
    %757 = vmatprep.mubr.bf16.mxu0 0
    %758 = vmatmul.mubr.bf16.gmra.mrb[0].mxu0 %v664
    %v759 = vpop.f32.mrb[0].mxu0
    %v760 = vadd.f32 0.0, %v759
    %v761 = vpop.f32.mrb[0].mxu0
    %v762 = vadd.f32 0.0, %v761
    %v763 = vpop.f32.mrb[0].mxu0
    %v764 = vadd.f32 0.0, %v763
    %v765 = vpop.f32.mrb[0].mxu0
    %v766 = vadd.f32 0.0, %v765
    %767 = vmatprep.mubr.bf16.mxu0 0
    %768 = vmatmul.mubr.bf16.gmra.mrb[0].mxu0 %v665
    %v769 = vpop.f32.mrb[0].mxu0
    %v770 = vadd.f32 0.0, %v769
    %v771 = vpop.f32.mrb[0].mxu0
    %v772 = vadd.f32 0.0, %v771
    %v773 = vpop.f32.mrb[0].mxu0
    %v774 = vadd.f32 0.0, %v773
    %v775 = vpop.f32.mrb[0].mxu0
    %v776 = vadd.f32 0.0, %v775
    %777 = vmatprep.mubr.bf16.mxu0 0
    %778 = vmatmul.mubr.bf16.gmra.mrb[0].mxu0 %v666
    %v779 = vpop.f32.mrb[0].mxu0
    %v780 = vadd.f32 0.0, %v779
    %v781 = vpop.f32.mrb[0].mxu0
    %v782 = vadd.f32 0.0, %v781
    %v783 = vpop.f32.mrb[0].mxu0
    %v784 = vadd.f32 0.0, %v783
    %v785 = vpop.f32.mrb[0].mxu0
    %v786 = vadd.f32 0.0, %v785
    %787 = vmatprep.mubr.bf16.mxu0 0
    %788 = vmatmul.mubr.bf16.gmra.mrb[0].mxu0 %v667
    %v789 = vpop.f32.mrb[0].mxu0
    %v790 = vadd.f32 0.0, %v789
    %v791 = vpop.f32.mrb[0].mxu0
    %v792 = vadd.f32 0.0, %v791
    %v793 = vpop.f32.mrb[0].mxu0
    %v794 = vadd.f32 0.0, %v793
    %v795 = vpop.f32.mrb[0].mxu0
    %v796 = vadd.f32 0.0, %v795
    %797 = vmatprep.mubr.bf16.mxu0 0
    %798 = vmatmul.mubr.bf16.gmra.mrb[0].mxu0 %v668
    %v799 = vpop.f32.mrb[0].mxu0
    %v800 = vadd.f32 0.0, %v799
    %v801 = vpop.f32.mrb[0].mxu0
    %v802 = vadd.f32 0.0, %v801
    %v803 = vpop.f32.mrb[0].mxu0
    %v804 = vadd.f32 0.0, %v803
    %v805 = vpop.f32.mrb[0].mxu0
    %v806 = vadd.f32 0.0, %v805
    %807 = vmatprep.mubr.bf16.mxu0 0
    %808 = vmatmul.mubr.bf16.gmra.mrb[0].mxu0 %v669
    %v809 = vpop.f32.mrb[0].mxu0
    %v810 = vadd.f32 0.0, %v809
    %v811 = vpop.f32.mrb[0].mxu0
    %v812 = vadd.f32 0.0, %v811
    %v813 = vpop.f32.mrb[0].mxu0
    %v814 = vadd.f32 0.0, %v813
    %v815 = vpop.f32.mrb[0].mxu0
    %v816 = vadd.f32 0.0, %v815
    %817 = vmatprep.mubr.bf16.mxu0 0
    %818 = vmatmul.mubr.bf16.gmra.mrb[0].mxu0 %v670
    %v819 = vpop.f32.mrb[0].mxu0
    %v820 = vadd.f32 0.0, %v819
    %v821 = vpop.f32.mrb[0].mxu0
    %v822 = vadd.f32 0.0, %v821
    %v823 = vpop.f32.mrb[0].mxu0
    %v824 = vadd.f32 0.0, %v823
    %v825 = vpop.f32.mrb[0].mxu0
    %v826 = vadd.f32 0.0, %v825
    %827 = vmatprep.mubr.bf16.mxu0 0
    %828 = vmatmul.mubr.bf16.gmra.mrb[0].mxu0 %v671
    %v829 = vpop.f32.mrb[0].mxu0
    %v830 = vadd.f32 0.0, %v829
    %v831 = vpop.f32.mrb[0].mxu0
    %v832 = vadd.f32 0.0, %v831
    %v833 = vpop.f32.mrb[0].mxu0
    %v834 = vadd.f32 0.0, %v833
    %v835 = vpop.f32.mrb[0].mxu0
    %v836 = vadd.f32 0.0, %v835
    %837 = vmatprep.mubr.bf16.mxu0 0
    %838 = vmatmul.mubr.bf16.gmra.mrb[0].mxu0 %v672
    %v839 = vpop.f32.mrb[0].mxu0
    %v840 = vadd.f32 0.0, %v839
    %v841 = vpop.f32.mrb[0].mxu0
    %v842 = vadd.f32 0.0, %v841
    %v843 = vpop.f32.mrb[0].mxu0
    %v844 = vadd.f32 0.0, %v843
    %v845 = vpop.f32.mrb[0].mxu0
    %v846 = vadd.f32 0.0, %v845
    %847 = vmatprep.mubr.bf16.mxu0 0
    %848 = vmatmul.mubr.bf16.gmra.mrb[0].mxu0 %v673
    %v849 = vpop.f32.mrb[0].mxu0
    %v850 = vadd.f32 0.0, %v849
    %v851 = vpop.f32.mrb[0].mxu0
    %v852 = vadd.f32 0.0, %v851
    %v853 = vpop.f32.mrb[0].mxu0
    %v854 = vadd.f32 0.0, %v853
    %v855 = vpop.f32.mrb[0].mxu0
    %v856 = vadd.f32 0.0, %v855
    %857 = vmatprep.mubr.bf16.mxu0 0
    %858 = vmatmul.mubr.bf16.gmra.mrb[0].mxu0 %v674
    %v859 = vpop.f32.mrb[0].mxu0
    %v860 = vadd.f32 0.0, %v859
    %v861 = vpop.f32.mrb[0].mxu0
    %v862 = vadd.f32 0.0, %v861
    %v863 = vpop.f32.mrb[0].mxu0
    %v864 = vadd.f32 0.0, %v863
    %v865 = vpop.f32.mrb[0].mxu0
    %v866 = vadd.f32 0.0, %v865
    %867 = vdwg.mxu0
    %v868 = vld [vmem:[#allocation3] sm:$0xff]
    %v869 = vld [vmem:[#allocation3 + $0x8] sm:$0xff]
    %v870 = vld [vmem:[#allocation3 + $0x10] sm:$0xff]
    %v871 = vld [vmem:[#allocation3 + $0x18] sm:$0xff]
    %v872 = vld [vmem:[#allocation3 + $0x20] sm:$0xff]
    %v873 = vld [vmem:[#allocation3 + $0x28] sm:$0xff]
    %v874 = vld [vmem:[#allocation3 + $0x30] sm:$0xff]
    %v875 = vld [vmem:[#allocation3 + $0x38] sm:$0xff]
    %v876 = vld [vmem:[#allocation3 + $0x40] sm:$0xff]
    %v877 = vld [vmem:[#allocation3 + $0x48] sm:$0xff]
    %v878 = vld [vmem:[#allocation3 + $0x50] sm:$0xff]
    %v879 = vld [vmem:[#allocation3 + $0x58] sm:$0xff]
    %v880 = vld [vmem:[#allocation3 + $0x60] sm:$0xff]
    %v881 = vld [vmem:[#allocation3 + $0x68] sm:$0xff]
    %v882 = vld [vmem:[#allocation3 + $0x70] sm:$0xff]
    %v883 = vld [vmem:[#allocation3 + $0x78] sm:$0xff]
    %v884 = vld [vmem:[#allocation3 + $0x80] sm:$0xff]
    %v885 = vld [vmem:[#allocation3 + $0x88] sm:$0xff]
    %v886 = vld [vmem:[#allocation3 + $0x90] sm:$0xff]
    %v887 = vld [vmem:[#allocation3 + $0x98] sm:$0xff]
    %v888 = vld [vmem:[#allocation3 + $0xa0] sm:$0xff]
    %v889 = vld [vmem:[#allocation3 + $0xa8] sm:$0xff]
    %v890 = vld [vmem:[#allocation3 + $0xb0] sm:$0xff]
    %v891 = vld [vmem:[#allocation3 + $0xb8] sm:$0xff]
    %v892 = vld [vmem:[#allocation3 + $0xc0] sm:$0xff]
    %v893 = vld [vmem:[#allocation3 + $0xc8] sm:$0xff]
    %v894 = vld [vmem:[#allocation3 + $0xd0] sm:$0xff]
    %v895 = vld [vmem:[#allocation3 + $0xd8] sm:$0xff]
    %v896 = vld [vmem:[#allocation3 + $0xe0] sm:$0xff]
    %v897 = vld [vmem:[#allocation3 + $0xe8] sm:$0xff]
    %v898 = vld [vmem:[#allocation3 + $0xf0] sm:$0xff]
    %v899 = vld [vmem:[#allocation3 + $0xf8] sm:$0xff]
    %v900 = vmax.f32 %v710, %v712
    %901 = vmax.xlane.f32.xlu0 %v900
    %v902 = vpop.xlane.xlu0 %901
    %v903 = vmax.f32 %v714, %v716
    %904 = vmax.xlane.f32.xlu0 %v903
    %v905 = vpop.xlane.xlu0 %904
    %v906 = vmax.f32 %v720, %v722
    %907 = vmax.xlane.f32.xlu0 %v906
    %v908 = vpop.xlane.xlu0 %907
    %v909 = vmax.f32 %v724, %v726
    %910 = vmax.xlane.f32.xlu0 %v909
    %v911 = vpop.xlane.xlu0 %910
    %v912 = vmax.f32 %v730, %v732
    %913 = vmax.xlane.f32.xlu0 %v912
    %v914 = vpop.xlane.xlu0 %913
    %v915 = vmax.f32 %v734, %v736
    %916 = vmax.xlane.f32.xlu0 %v915
    %v917 = vpop.xlane.xlu0 %916
    %v918 = vmax.f32 %v740, %v742
    %919 = vmax.xlane.f32.xlu0 %v918
    %v920 = vpop.xlane.xlu0 %919
    %v921 = vmax.f32 %v744, %v746
    %922 = vmax.xlane.f32.xlu0 %v921
    %v923 = vpop.xlane.xlu0 %922
    %v924 = vmax.f32 %v750, %v752
    %925 = vmax.xlane.f32.xlu0 %v924
    %v926 = vpop.xlane.xlu0 %925
    %v927 = vmax.f32 %v754, %v756
    %928 = vmax.xlane.f32.xlu0 %v927
    %v929 = vpop.xlane.xlu0 %928
    %v930 = vmax.f32 %v760, %v762
    %931 = vmax.xlane.f32.xlu0 %v930
    %v932 = vpop.xlane.xlu0 %931
    %v933 = vmax.f32 %v764, %v766
    %934 = vmax.xlane.f32.xlu0 %v933
    %v935 = vpop.xlane.xlu0 %934
    %v936 = vmax.f32 %v770, %v772
    %937 = vmax.xlane.f32.xlu0 %v936
    %v938 = vpop.xlane.xlu0 %937
    %v939 = vmax.f32 %v774, %v776
    %940 = vmax.xlane.f32.xlu0 %v939
    %v941 = vpop.xlane.xlu0 %940
    %v942 = vmax.f32 %v780, %v782
    %943 = vmax.xlane.f32.xlu0 %v942
    %v944 = vpop.xlane.xlu0 %943
    %v945 = vmax.f32 %v784, %v786
    %946 = vmax.xlane.f32.xlu0 %v945
    %v947 = vpop.xlane.xlu0 %946
    %v948 = vmax.f32 %v790, %v792
    %949 = vmax.xlane.f32.xlu0 %v948
    %v950 = vpop.xlane.xlu0 %949
    %v951 = vmax.f32 %v794, %v796
    %952 = vmax.xlane.f32.xlu0 %v951
    %v953 = vpop.xlane.xlu0 %952
    %v954 = vmax.f32 %v800, %v802
    %955 = vmax.xlane.f32.xlu0 %v954
    %v956 = vpop.xlane.xlu0 %955
    %v957 = vmax.f32 %v804, %v806
    %958 = vmax.xlane.f32.xlu0 %v957
    %v959 = vpop.xlane.xlu0 %958
    %v960 = vmax.f32 %v810, %v812
    %961 = vmax.xlane.f32.xlu0 %v960
    %v962 = vpop.xlane.xlu0 %961
    %v963 = vmax.f32 %v814, %v816
    %964 = vmax.xlane.f32.xlu0 %v963
    %v965 = vpop.xlane.xlu0 %964
    %v966 = vmax.f32 %v820, %v822
    %967 = vmax.xlane.f32.xlu0 %v966
    %v968 = vpop.xlane.xlu0 %967
    %v969 = vmax.f32 %v824, %v826
    %970 = vmax.xlane.f32.xlu0 %v969
    %v971 = vpop.xlane.xlu0 %970
    %v972 = vmax.f32 %v830, %v832
    %973 = vmax.xlane.f32.xlu0 %v972
    %v974 = vpop.xlane.xlu0 %973
    %v975 = vmax.f32 %v834, %v836
    %976 = vmax.xlane.f32.xlu0 %v975
    %v977 = vpop.xlane.xlu0 %976
    %v978 = vmax.f32 %v840, %v842
    %979 = vmax.xlane.f32.xlu0 %v978
    %v980 = vpop.xlane.xlu0 %979
    %v981 = vmax.f32 %v844, %v846
    %982 = vmax.xlane.f32.xlu0 %v981
    %v983 = vpop.xlane.xlu0 %982
    %v984 = vmax.f32 %v850, %v852
    %985 = vmax.xlane.f32.xlu0 %v984
    %v986 = vpop.xlane.xlu0 %985
    %v987 = vmax.f32 %v854, %v856
    %988 = vmax.xlane.f32.xlu0 %v987
    %v989 = vpop.xlane.xlu0 %988
    %v990 = vmax.f32 %v860, %v862
    %991 = vmax.xlane.f32.xlu0 %v990
    %v992 = vpop.xlane.xlu0 %991
    %v993 = vmax.f32 %v864, %v866
    %994 = vmax.xlane.f32.xlu0 %v993
    %v995 = vpop.xlane.xlu0 %994
    %v996 = vmax.f32 %v868, %v902
    %v997 = vmax.f32 %v869, %v905
    %v998 = vmax.f32 %v870, %v908
    %v999 = vmax.f32 %v871, %v911
    %v1000 = vmax.f32 %v872, %v914
    %v1001 = vmax.f32 %v873, %v917
    %v1002 = vmax.f32 %v874, %v920
    %v1003 = vmax.f32 %v875, %v923
    %v1004 = vmax.f32 %v876, %v926
    %v1005 = vmax.f32 %v877, %v929
    %v1006 = vmax.f32 %v878, %v932
    %v1007 = vmax.f32 %v879, %v935
    %v1008 = vmax.f32 %v880, %v938
    %v1009 = vmax.f32 %v881, %v941
    %v1010 = vmax.f32 %v882, %v944
    %v1011 = vmax.f32 %v883, %v947
    %v1012 = vmax.f32 %v884, %v950
    %v1013 = vmax.f32 %v885, %v953
    %v1014 = vmax.f32 %v886, %v956
    %v1015 = vmax.f32 %v887, %v959
    %v1016 = vmax.f32 %v888, %v962
    %v1017 = vmax.f32 %v889, %v965
    %v1018 = vmax.f32 %v890, %v968
    %v1019 = vmax.f32 %v891, %v971
    %v1020 = vmax.f32 %v892, %v974
    %v1021 = vmax.f32 %v893, %v977
    %v1022 = vmax.f32 %v894, %v980
    %v1023 = vmax.f32 %v895, %v983
    %v1024 = vmax.f32 %v896, %v986
    %v1025 = vmax.f32 %v897, %v989
    %v1026 = vmax.f32 %v898, %v992
    %v1027 = vmax.f32 %v899, %v995
    %vm1028 = vcmask 7168
    %1029 = vst.msk [vmem:[#allocation3] sm:$0xff] %vm1028, %v996
    %1030 = vst.msk [vmem:[#allocation3 + $0x8] sm:$0xff] %vm1028, %v997
    %1031 = vst.msk [vmem:[#allocation3 + $0x10] sm:$0xff] %vm1028, %v998
    %1032 = vst.msk [vmem:[#allocation3 + $0x18] sm:$0xff] %vm1028, %v999
    %1033 = vst.msk [vmem:[#allocation3 + $0x20] sm:$0xff] %vm1028, %v1000
    %1034 = vst.msk [vmem:[#allocation3 + $0x28] sm:$0xff] %vm1028, %v1001
    %1035 = vst.msk [vmem:[#allocation3 + $0x30] sm:$0xff] %vm1028, %v1002
    %1036 = vst.msk [vmem:[#allocation3 + $0x38] sm:$0xff] %vm1028, %v1003
    %1037 = vst.msk [vmem:[#allocation3 + $0x40] sm:$0xff] %vm1028, %v1004
    %1038 = vst.msk [vmem:[#allocation3 + $0x48] sm:$0xff] %vm1028, %v1005
    %1039 = vst.msk [vmem:[#allocation3 + $0x50] sm:$0xff] %vm1028, %v1006
    %1040 = vst.msk [vmem:[#allocation3 + $0x58] sm:$0xff] %vm1028, %v1007
    %1041 = vst.msk [vmem:[#allocation3 + $0x60] sm:$0xff] %vm1028, %v1008
    %1042 = vst.msk [vmem:[#allocation3 + $0x68] sm:$0xff] %vm1028, %v1009
    %1043 = vst.msk [vmem:[#allocation3 + $0x70] sm:$0xff] %vm1028, %v1010
    %1044 = vst.msk [vmem:[#allocation3 + $0x78] sm:$0xff] %vm1028, %v1011
    %1045 = vst.msk [vmem:[#allocation3 + $0x80] sm:$0xff] %vm1028, %v1012
    %1046 = vst.msk [vmem:[#allocation3 + $0x88] sm:$0xff] %vm1028, %v1013
    %1047 = vst.msk [vmem:[#allocation3 + $0x90] sm:$0xff] %vm1028, %v1014
    %1048 = vst.msk [vmem:[#allocation3 + $0x98] sm:$0xff] %vm1028, %v1015
    %1049 = vst.msk [vmem:[#allocation3 + $0xa0] sm:$0xff] %vm1028, %v1016
    %1050 = vst.msk [vmem:[#allocation3 + $0xa8] sm:$0xff] %vm1028, %v1017
    %1051 = vst.msk [vmem:[#allocation3 + $0xb0] sm:$0xff] %vm1028, %v1018
    %1052 = vst.msk [vmem:[#allocation3 + $0xb8] sm:$0xff] %vm1028, %v1019
    %1053 = vst.msk [vmem:[#allocation3 + $0xc0] sm:$0xff] %vm1028, %v1020
    %1054 = vst.msk [vmem:[#allocation3 + $0xc8] sm:$0xff] %vm1028, %v1021
    %1055 = vst.msk [vmem:[#allocation3 + $0xd0] sm:$0xff] %vm1028, %v1022
    %1056 = vst.msk [vmem:[#allocation3 + $0xd8] sm:$0xff] %vm1028, %v1023
    %1057 = vst.msk [vmem:[#allocation3 + $0xe0] sm:$0xff] %vm1028, %v1024
    %1058 = vst.msk [vmem:[#allocation3 + $0xe8] sm:$0xff] %vm1028, %v1025
    %1059 = vst.msk [vmem:[#allocation3 + $0xf0] sm:$0xff] %vm1028, %v1026
    %1060 = vst.msk [vmem:[#allocation3 + $0xf8] sm:$0xff] %vm1028, %v1027
    // Predicated region
    $region66: #{tpu_custom_call.1} parent=1 // pred_check
      %p1061 = pneg %p126
    $region67: #{tpu_custom_call.1} parent=1 // pred_check_branch
      %1063 = sbr.rel (%p1061) target = $region69
    $region68: #{tpu_custom_call.1} parent=1 // pred_region
      %v1064 = vld [vmem:[#allocation3] sm:$0xff]
      %v1065 = vld [vmem:[#allocation3 + $0x8] sm:$0xff]
      %v1066 = vld [vmem:[#allocation3 + $0x10] sm:$0xff]
      %v1067 = vld [vmem:[#allocation3 + $0x18] sm:$0xff]
      %v1068 = vld [vmem:[#allocation3 + $0x20] sm:$0xff]
      %v1069 = vld [vmem:[#allocation3 + $0x28] sm:$0xff]
      %v1070 = vld [vmem:[#allocation3 + $0x30] sm:$0xff]
      %v1071 = vld [vmem:[#allocation3 + $0x38] sm:$0xff]
      %v1072 = vld [vmem:[#allocation3 + $0x40] sm:$0xff]
      %v1073 = vld [vmem:[#allocation3 + $0x48] sm:$0xff]
      %v1074 = vld [vmem:[#allocation3 + $0x50] sm:$0xff]
      %v1075 = vld [vmem:[#allocation3 + $0x58] sm:$0xff]
      %v1076 = vld [vmem:[#allocation3 + $0x60] sm:$0xff]
      %v1077 = vld [vmem:[#allocation3 + $0x68] sm:$0xff]
      %v1078 = vld [vmem:[#allocation3 + $0x70] sm:$0xff]
      %v1079 = vld [vmem:[#allocation3 + $0x78] sm:$0xff]
      %v1080 = vld [vmem:[#allocation3 + $0x80] sm:$0xff]
      %v1081 = vld [vmem:[#allocation3 + $0x88] sm:$0xff]
      %v1082 = vld [vmem:[#allocation3 + $0x90] sm:$0xff]
      %v1083 = vld [vmem:[#allocation3 + $0x98] sm:$0xff]
      %v1084 = vld [vmem:[#allocation3 + $0xa0] sm:$0xff]
      %v1085 = vld [vmem:[#allocation3 + $0xa8] sm:$0xff]
      %v1086 = vld [vmem:[#allocation3 + $0xb0] sm:$0xff]
      %v1087 = vld [vmem:[#allocation3 + $0xb8] sm:$0xff]
      %v1088 = vld [vmem:[#allocation3 + $0xc0] sm:$0xff]
      %v1089 = vld [vmem:[#allocation3 + $0xc8] sm:$0xff]
      %v1090 = vld [vmem:[#allocation3 + $0xd0] sm:$0xff]
      %v1091 = vld [vmem:[#allocation3 + $0xd8] sm:$0xff]
      %v1092 = vld [vmem:[#allocation3 + $0xe0] sm:$0xff]
      %v1093 = vld [vmem:[#allocation3 + $0xe8] sm:$0xff]
      %v1094 = vld [vmem:[#allocation3 + $0xf0] sm:$0xff]
      %v1095 = vld [vmem:[#allocation3 + $0xf8] sm:$0xff]
      %v1096 = vsub.f32 1.0, %v1064
      %v1097 = vsub.f32 1.0, %v1065
      %v1098 = vsub.f32 1.0, %v1066
      %v1099 = vsub.f32 1.0, %v1067
      %v1100 = vsub.f32 1.0, %v1068
      %v1101 = vsub.f32 1.0, %v1069
      %v1102 = vsub.f32 1.0, %v1070
      %v1103 = vsub.f32 1.0, %v1071
      %v1104 = vsub.f32 1.0, %v1072
      %v1105 = vsub.f32 1.0, %v1073
      %v1106 = vsub.f32 1.0, %v1074
      %v1107 = vsub.f32 1.0, %v1075
      %v1108 = vsub.f32 1.0, %v1076
      %v1109 = vsub.f32 1.0, %v1077
      %v1110 = vsub.f32 1.0, %v1078
      %v1111 = vsub.f32 1.0, %v1079
      %v1112 = vsub.f32 1.0, %v1080
      %v1113 = vsub.f32 1.0, %v1081
      %v1114 = vsub.f32 1.0, %v1082
      %v1115 = vsub.f32 1.0, %v1083
      %v1116 = vsub.f32 1.0, %v1084
      %v1117 = vsub.f32 1.0, %v1085
      %v1118 = vsub.f32 1.0, %v1086
      %v1119 = vsub.f32 1.0, %v1087
      %v1120 = vsub.f32 1.0, %v1088
      %v1121 = vsub.f32 1.0, %v1089
      %v1122 = vsub.f32 1.0, %v1090
      %v1123 = vsub.f32 1.0, %v1091
      %v1124 = vsub.f32 1.0, %v1092
      %v1125 = vsub.f32 1.0, %v1093
      %v1126 = vsub.f32 1.0, %v1094
      %v1127 = vsub.f32 1.0, %v1095
      %v1128 = vsel %vm1028, %v1096, 0.0
      %v1129 = vsel %vm1028, %v1097, 0.0
      %v1130 = vadd.f32 %v1128, %v1129
      %v1131 = vsel %vm1028, %v1098, 0.0
      %v1132 = vadd.f32 %v1130, %v1131
      %v1133 = vsel %vm1028, %v1099, 0.0
      %v1134 = vadd.f32 %v1132, %v1133
      %v1135 = vsel %vm1028, %v1100, 0.0
      %v1136 = vadd.f32 %v1134, %v1135
      %v1137 = vsel %vm1028, %v1101, 0.0
      %v1138 = vadd.f32 %v1136, %v1137
      %v1139 = vsel %vm1028, %v1102, 0.0
      %v1140 = vadd.f32 %v1138, %v1139
      %v1141 = vsel %vm1028, %v1103, 0.0
      %v1142 = vadd.f32 %v1140, %v1141
      %v1143 = vsel %vm1028, %v1104, 0.0
      %v1144 = vadd.f32 %v1142, %v1143
      %v1145 = vsel %vm1028, %v1105, 0.0
      %v1146 = vadd.f32 %v1144, %v1145
      %v1147 = vsel %vm1028, %v1106, 0.0
      %v1148 = vadd.f32 %v1146, %v1147
      %v1149 = vsel %vm1028, %v1107, 0.0
      %v1150 = vadd.f32 %v1148, %v1149
      %v1151 = vsel %vm1028, %v1108, 0.0
      %v1152 = vadd.f32 %v1150, %v1151
      %v1153 = vsel %vm1028, %v1109, 0.0
      %v1154 = vadd.f32 %v1152, %v1153
      %v1155 = vsel %vm1028, %v1110, 0.0
      %v1156 = vadd.f32 %v1154, %v1155
      %v1157 = vsel %vm1028, %v1111, 0.0
      %v1158 = vadd.f32 %v1156, %v1157
      %v1159 = vsel %vm1028, %v1112, 0.0
      %v1160 = vadd.f32 %v1158, %v1159
      %v1161 = vsel %vm1028, %v1113, 0.0
      %v1162 = vadd.f32 %v1160, %v1161
      %v1163 = vsel %vm1028, %v1114, 0.0
      %v1164 = vadd.f32 %v1162, %v1163
      %v1165 = vsel %vm1028, %v1115, 0.0
      %v1166 = vadd.f32 %v1164, %v1165
      %v1167 = vsel %vm1028, %v1116, 0.0
      %v1168 = vadd.f32 %v1166, %v1167
      %v1169 = vsel %vm1028, %v1117, 0.0
      %v1170 = vadd.f32 %v1168, %v1169
      %v1171 = vsel %vm1028, %v1118, 0.0
      %v1172 = vadd.f32 %v1170, %v1171
      %v1173 = vsel %vm1028, %v1119, 0.0
      %v1174 = vadd.f32 %v1172, %v1173
      %v1175 = vsel %vm1028, %v1120, 0.0
      %v1176 = vadd.f32 %v1174, %v1175
      %v1177 = vsel %vm1028, %v1121, 0.0
      %v1178 = vadd.f32 %v1176, %v1177
      %v1179 = vsel %vm1028, %v1122, 0.0
      %v1180 = vadd.f32 %v1178, %v1179
      %v1181 = vsel %vm1028, %v1123, 0.0
      %v1182 = vadd.f32 %v1180, %v1181
      %v1183 = vsel %vm1028, %v1124, 0.0
      %v1184 = vadd.f32 %v1182, %v1183
      %v1185 = vsel %vm1028, %v1125, 0.0
      %v1186 = vadd.f32 %v1184, %v1185
      %v1187 = vsel %vm1028, %v1126, 0.0
      %v1188 = vadd.f32 %v1186, %v1187
      %v1189 = vsel %vm1028, %v1127, 0.0
      %v1190 = vadd.f32 %v1188, %v1189
      %1191 = vadd.xlane.f32.xlu0 %v1190
      %v1192 = vpop.xlane.xlu0 %1191
      %v1193 = vrot.slane %v1192, 4
      %v1194 = vadd.f32 %v1192, %v1193
      %v1195 = vrot.slane %v1194, 2
      %v1196 = vadd.f32 %v1194, %v1195
      %v1197 = vrot.slane %v1196, 1
      %v1198 = vadd.f32 %v1196, %v1197
      %s1199 = vtos %v1198
      %v1200 = vrcp.pop 256.0
      %s1201 = vtos %v1200
      %s1202 = smul.f32 %s1199, %s1201
      %v1203 = vld [vmem:[#allocation9] sm:$0xff]
      %v1204 = vld [vmem:[#allocation9 + $0x8] sm:$0xff]
      %v1205 = vld [vmem:[#allocation9 + $0x10] sm:$0xff]
      %v1206 = vld [vmem:[#allocation9 + $0x18] sm:$0xff]
      %v1207 = vld [vmem:[#allocation9 + $0x20] sm:$0xff]
      %v1208 = vld [vmem:[#allocation9 + $0x28] sm:$0xff]
      %v1209 = vld [vmem:[#allocation9 + $0x30] sm:$0xff]
      %v1210 = vld [vmem:[#allocation9 + $0x38] sm:$0xff]
      %v1211 = vld [vmem:[#allocation9 + $0x40] sm:$0xff]
      %v1212 = vld [vmem:[#allocation9 + $0x48] sm:$0xff]
      %v1213 = vld [vmem:[#allocation9 + $0x50] sm:$0xff]
      %v1214 = vld [vmem:[#allocation9 + $0x58] sm:$0xff]
      %v1215 = vld [vmem:[#allocation9 + $0x60] sm:$0xff]
      %v1216 = vld [vmem:[#allocation9 + $0x68] sm:$0xff]
      %v1217 = vld [vmem:[#allocation9 + $0x70] sm:$0xff]
      %v1218 = vld [vmem:[#allocation9 + $0x78] sm:$0xff]
      %v1219 = vld [vmem:[#allocation10] sm:$0xff]
      %v1220 = vld [vmem:[#allocation10 + $0x8] sm:$0xff]
      %v1221 = vld [vmem:[#allocation10 + $0x10] sm:$0xff]
      %v1222 = vld [vmem:[#allocation10 + $0x18] sm:$0xff]
      %v1223 = vld [vmem:[#allocation10 + $0x20] sm:$0xff]
      %v1224 = vld [vmem:[#allocation10 + $0x28] sm:$0xff]
      %v1225 = vld [vmem:[#allocation10 + $0x30] sm:$0xff]
      %v1226 = vld [vmem:[#allocation10 + $0x38] sm:$0xff]
      %v1227 = vld [vmem:[#allocation10 + $0x40] sm:$0xff]
      %v1228 = vld [vmem:[#allocation10 + $0x48] sm:$0xff]
      %v1229 = vld [vmem:[#allocation10 + $0x50] sm:$0xff]
      %v1230 = vld [vmem:[#allocation10 + $0x58] sm:$0xff]
      %v1231 = vld [vmem:[#allocation10 + $0x60] sm:$0xff]
      %v1232 = vld [vmem:[#allocation10 + $0x68] sm:$0xff]
      %v1233 = vld [vmem:[#allocation10 + $0x70] sm:$0xff]
      %v1234 = vld [vmem:[#allocation10 + $0x78] sm:$0xff]
      %v1235 = vsub.f32 %v1203, %v1219
      %v1236 = vsub.f32 %v1204, %v1220
      %v1237 = vsub.f32 %v1205, %v1221
      %v1238 = vsub.f32 %v1206, %v1222
      %v1239 = vsub.f32 %v1207, %v1223
      %v1240 = vsub.f32 %v1208, %v1224
      %v1241 = vsub.f32 %v1209, %v1225
      %v1242 = vsub.f32 %v1210, %v1226
      %v1243 = vsub.f32 %v1211, %v1227
      %v1244 = vsub.f32 %v1212, %v1228
      %v1245 = vsub.f32 %v1213, %v1229
      %v1246 = vsub.f32 %v1214, %v1230
      %v1247 = vsub.f32 %v1215, %v1231
      %v1248 = vsub.f32 %v1216, %v1232
      %v1249 = vsub.f32 %v1217, %v1233
      %v1250 = vsub.f32 %v1218, %v1234
      %v1251 = vmul.f32 %v1235, %v1235
      %v1252 = vmul.f32 %v1236, %v1236
      %v1253 = vmul.f32 %v1237, %v1237
      %v1254 = vmul.f32 %v1238, %v1238
      %v1255 = vmul.f32 %v1239, %v1239
      %v1256 = vmul.f32 %v1240, %v1240
      %v1257 = vmul.f32 %v1241, %v1241
      %v1258 = vmul.f32 %v1242, %v1242
      %v1259 = vmul.f32 %v1243, %v1243
      %v1260 = vmul.f32 %v1244, %v1244
      %v1261 = vmul.f32 %v1245, %v1245
      %v1262 = vmul.f32 %v1246, %v1246
      %v1263 = vmul.f32 %v1247, %v1247
      %v1264 = vmul.f32 %v1248, %v1248
      %v1265 = vmul.f32 %v1249, %v1249
      %v1266 = vmul.f32 %v1250, %v1250
      %v1267 = vadd.f32 %v1251, %v1252
      %v1268 = vadd.f32 %v1267, %v1253
      %v1269 = vadd.f32 %v1268, %v1254
      %v1270 = vadd.f32 %v1269, %v1255
      %v1271 = vadd.f32 %v1270, %v1256
      %v1272 = vadd.f32 %v1271, %v1257
      %v1273 = vadd.f32 %v1272, %v1258
      %v1274 = vadd.f32 %v1273, %v1259
      %v1275 = vadd.f32 %v1274, %v1260
      %v1276 = vadd.f32 %v1275, %v1261
      %v1277 = vadd.f32 %v1276, %v1262
      %v1278 = vadd.f32 %v1277, %v1263
      %v1279 = vadd.f32 %v1278, %v1264
      %v1280 = vadd.f32 %v1279, %v1265
      %v1281 = vadd.f32 %v1280, %v1266
      %1282 = vadd.xlane.f32.xlu0 %v1281
      %v1283 = vpop.xlane.xlu0 %1282
      %v1284 = vrot.slane %v1283, 4
      %v1285 = vadd.f32 %v1283, %v1284
      %v1286 = vrot.slane %v1285, 2
      %v1287 = vadd.f32 %v1285, %v1286
      %v1288 = vrot.slane %v1287, 1
      %v1289 = vadd.f32 %v1287, %v1288
      %s1290 = vtos %v1289
      %v1291 = vrcp.pop 16384.0
      %s1292 = vtos %v1291
      %s1293 = smul.f32 %s1290, %s1292
      %v1294 = vld [vmem:[#allocation12] sm:$0xff]
      %v1295 = vld [vmem:[#allocation12 + $0x8] sm:$0xff]
      %v1296 = vld [vmem:[#allocation12 + $0x10] sm:$0xff]
      %v1297 = vld [vmem:[#allocation12 + $0x18] sm:$0xff]
      %v1298 = vld [vmem:[#allocation12 + $0x20] sm:$0xff]
      %v1299 = vld [vmem:[#allocation12 + $0x28] sm:$0xff]
      %v1300 = vld [vmem:[#allocation12 + $0x30] sm:$0xff]
      %v1301 = vld [vmem:[#allocation12 + $0x38] sm:$0xff]
      %v1302 = vld [vmem:[#allocation13] sm:$0xff]
      %v1303 = vld [vmem:[#allocation13 + $0x8] sm:$0xff]
      %v1304 = vld [vmem:[#allocation13 + $0x10] sm:$0xff]
      %v1305 = vld [vmem:[#allocation13 + $0x18] sm:$0xff]
      %v1306 = vld [vmem:[#allocation13 + $0x20] sm:$0xff]
      %v1307 = vld [vmem:[#allocation13 + $0x28] sm:$0xff]
      %v1308 = vld [vmem:[#allocation13 + $0x30] sm:$0xff]
      %v1309 = vld [vmem:[#allocation13 + $0x38] sm:$0xff]
      %v1310 = vsub.f32 %v1294, %v1302
      %v1311 = vsub.f32 %v1295, %v1303
      %v1312 = vsub.f32 %v1296, %v1304
      %v1313 = vsub.f32 %v1297, %v1305
      %v1314 = vsub.f32 %v1298, %v1306
      %v1315 = vsub.f32 %v1299, %v1307
      %v1316 = vsub.f32 %v1300, %v1308
      %v1317 = vsub.f32 %v1301, %v1309
      %v1318 = vmul.f32 %v1310, %v1310
      %v1319 = vmul.f32 %v1311, %v1311
      %v1320 = vmul.f32 %v1312, %v1312
      %v1321 = vmul.f32 %v1313, %v1313
      %v1322 = vmul.f32 %v1314, %v1314
      %v1323 = vmul.f32 %v1315, %v1315
      %v1324 = vmul.f32 %v1316, %v1316
      %v1325 = vmul.f32 %v1317, %v1317
      %v1326 = vadd.f32 %v1318, %v1319
      %v1327 = vadd.f32 %v1326, %v1320
      %v1328 = vadd.f32 %v1327, %v1321
      %v1329 = vadd.f32 %v1328, %v1322
      %v1330 = vadd.f32 %v1329, %v1323
      %v1331 = vadd.f32 %v1330, %v1324
      %v1332 = vadd.f32 %v1331, %v1325
      %1333 = vadd.xlane.f32.xlu0 %v1332
      %v1334 = vpop.xlane.xlu0 %1333
      %v1335 = vrot.slane %v1334, 4
      %v1336 = vadd.f32 %v1334, %v1335
      %v1337 = vrot.slane %v1336, 2
      %v1338 = vadd.f32 %v1336, %v1337
      %v1339 = vrot.slane %v1338, 1
      %v1340 = vadd.f32 %v1338, %v1339
      %s1341 = vtos %v1340
      %v1342 = vrcp.pop 8192.0
      %s1343 = vtos %v1342
      %s1344 = smul.f32 %s1341, %s1343
      %v1345 = vld [vmem:[#allocation15] sm:$0xff]
      %v1346 = vld [vmem:[#allocation15 + $0x8] sm:$0xff]
      %v1347 = vld [vmem:[#allocation15 + $0x10] sm:$0xff]
      %v1348 = vld [vmem:[#allocation15 + $0x18] sm:$0xff]
      %v1349 = vld [vmem:[#allocation15 + $0x20] sm:$0xff]
      %v1350 = vld [vmem:[#allocation15 + $0x28] sm:$0xff]
      %v1351 = vld [vmem:[#allocation15 + $0x30] sm:$0xff]
      %v1352 = vld [vmem:[#allocation15 + $0x38] sm:$0xff]
      %v1353 = vld [vmem:[#allocation15 + $0x40] sm:$0xff]
      %v1354 = vld [vmem:[#allocation15 + $0x48] sm:$0xff]
      %v1355 = vld [vmem:[#allocation15 + $0x50] sm:$0xff]
      %v1356 = vld [vmem:[#allocation15 + $0x58] sm:$0xff]
      %v1357 = vld [vmem:[#allocation15 + $0x60] sm:$0xff]
      %v1358 = vld [vmem:[#allocation15 + $0x68] sm:$0xff]
      %v1359 = vld [vmem:[#allocation15 + $0x70] sm:$0xff]
      %v1360 = vld [vmem:[#allocation15 + $0x78] sm:$0xff]
      %v1361 = vld [vmem:[#allocation15 + $0x80] sm:$0xff]
      %v1362 = vld [vmem:[#allocation15 + $0x88] sm:$0xff]
      %v1363 = vld [vmem:[#allocation15 + $0x90] sm:$0xff]
      %v1364 = vld [vmem:[#allocation15 + $0x98] sm:$0xff]
      %v1365 = vld [vmem:[#allocation15 + $0xa0] sm:$0xff]
      %v1366 = vld [vmem:[#allocation15 + $0xa8] sm:$0xff]
      %v1367 = vld [vmem:[#allocation15 + $0xb0] sm:$0xff]
      %v1368 = vld [vmem:[#allocation15 + $0xb8] sm:$0xff]
      %v1369 = vld [vmem:[#allocation15 + $0xc0] sm:$0xff]
      %v1370 = vld [vmem:[#allocation15 + $0xc8] sm:$0xff]
      %v1371 = vld [vmem:[#allocation15 + $0xd0] sm:$0xff]
      %v1372 = vld [vmem:[#allocation15 + $0xd8] sm:$0xff]
      %v1373 = vld [vmem:[#allocation15 + $0xe0] sm:$0xff]
      %v1374 = vld [vmem:[#allocation15 + $0xe8] sm:$0xff]
      %v1375 = vld [vmem:[#allocation15 + $0xf0] sm:$0xff]
      %v1376 = vld [vmem:[#allocation15 + $0xf8] sm:$0xff]
      %v1377 = vld [vmem:[%s7] sm:$0xff]
      %v1378 = vmul.f32 %v1345, %v1345
      %v1379 = vmul.f32 %v1346, %v1346
      %v1380 = vmul.f32 %v1347, %v1347
      %v1381 = vmul.f32 %v1348, %v1348
      %v1382 = vmul.f32 %v1349, %v1349
      %v1383 = vmul.f32 %v1350, %v1350
      %v1384 = vmul.f32 %v1351, %v1351
      %v1385 = vmul.f32 %v1352, %v1352
      %v1386 = vmul.f32 %v1353, %v1353
      %v1387 = vmul.f32 %v1354, %v1354
      %v1388 = vmul.f32 %v1355, %v1355
      %v1389 = vmul.f32 %v1356, %v1356
      %v1390 = vmul.f32 %v1357, %v1357
      %v1391 = vmul.f32 %v1358, %v1358
      %v1392 = vmul.f32 %v1359, %v1359
      %v1393 = vmul.f32 %v1360, %v1360
      %v1394 = vmul.f32 %v1361, %v1361
      %v1395 = vmul.f32 %v1362, %v1362
      %v1396 = vmul.f32 %v1363, %v1363
      %v1397 = vmul.f32 %v1364, %v1364
      %v1398 = vmul.f32 %v1365, %v1365
      %v1399 = vmul.f32 %v1366, %v1366
      %v1400 = vmul.f32 %v1367, %v1367
      %v1401 = vmul.f32 %v1368, %v1368
      %v1402 = vmul.f32 %v1369, %v1369
      %v1403 = vmul.f32 %v1370, %v1370
      %v1404 = vmul.f32 %v1371, %v1371
      %v1405 = vmul.f32 %v1372, %v1372
      %v1406 = vmul.f32 %v1373, %v1373
      %v1407 = vmul.f32 %v1374, %v1374
      %v1408 = vmul.f32 %v1375, %v1375
      %v1409 = vmul.f32 %v1376, %v1376
      %1410 = vadd.xlane.f32.xlu0 %v1378
      %v1411 = vpop.xlane.xlu0 %1410
      %1412 = vadd.xlane.f32.xlu0 %v1379
      %v1413 = vpop.xlane.xlu0 %1412
      %1414 = vadd.xlane.f32.xlu0 %v1380
      %v1415 = vpop.xlane.xlu0 %1414
      %1416 = vadd.xlane.f32.xlu0 %v1381
      %v1417 = vpop.xlane.xlu0 %1416
      %1418 = vadd.xlane.f32.xlu0 %v1382
      %v1419 = vpop.xlane.xlu0 %1418
      %1420 = vadd.xlane.f32.xlu0 %v1383
      %v1421 = vpop.xlane.xlu0 %1420
      %1422 = vadd.xlane.f32.xlu0 %v1384
      %v1423 = vpop.xlane.xlu0 %1422
      %1424 = vadd.xlane.f32.xlu0 %v1385
      %v1425 = vpop.xlane.xlu0 %1424
      %1426 = vadd.xlane.f32.xlu0 %v1386
      %v1427 = vpop.xlane.xlu0 %1426
      %1428 = vadd.xlane.f32.xlu0 %v1387
      %v1429 = vpop.xlane.xlu0 %1428
      %1430 = vadd.xlane.f32.xlu0 %v1388
      %v1431 = vpop.xlane.xlu0 %1430
      %1432 = vadd.xlane.f32.xlu0 %v1389
      %v1433 = vpop.xlane.xlu0 %1432
      %1434 = vadd.xlane.f32.xlu0 %v1390
      %v1435 = vpop.xlane.xlu0 %1434
      %1436 = vadd.xlane.f32.xlu0 %v1391
      %v1437 = vpop.xlane.xlu0 %1436
      %1438 = vadd.xlane.f32.xlu0 %v1392
      %v1439 = vpop.xlane.xlu0 %1438
      %1440 = vadd.xlane.f32.xlu0 %v1393
      %v1441 = vpop.xlane.xlu0 %1440
      %1442 = vadd.xlane.f32.xlu0 %v1394
      %v1443 = vpop.xlane.xlu0 %1442
      %1444 = vadd.xlane.f32.xlu0 %v1395
      %v1445 = vpop.xlane.xlu0 %1444
      %1446 = vadd.xlane.f32.xlu0 %v1396
      %v1447 = vpop.xlane.xlu0 %1446
      %1448 = vadd.xlane.f32.xlu0 %v1397
      %v1449 = vpop.xlane.xlu0 %1448
      %1450 = vadd.xlane.f32.xlu0 %v1398
      %v1451 = vpop.xlane.xlu0 %1450
      %1452 = vadd.xlane.f32.xlu0 %v1399
      %v1453 = vpop.xlane.xlu0 %1452
      %1454 = vadd.xlane.f32.xlu0 %v1400
      %v1455 = vpop.xlane.xlu0 %1454
      %1456 = vadd.xlane.f32.xlu0 %v1401
      %v1457 = vpop.xlane.xlu0 %1456
      %1458 = vadd.xlane.f32.xlu0 %v1402
      %v1459 = vpop.xlane.xlu0 %1458
      %1460 = vadd.xlane.f32.xlu0 %v1403
      %v1461 = vpop.xlane.xlu0 %1460
      %1462 = vadd.xlane.f32.xlu0 %v1404
      %v1463 = vpop.xlane.xlu0 %1462
      %1464 = vadd.xlane.f32.xlu0 %v1405
      %v1465 = vpop.xlane.xlu0 %1464
      %1466 = vadd.xlane.f32.xlu0 %v1406
      %v1467 = vpop.xlane.xlu0 %1466
      %1468 = vadd.xlane.f32.xlu0 %v1407
      %v1469 = vpop.xlane.xlu0 %1468
      %1470 = vadd.xlane.f32.xlu0 %v1408
      %v1471 = vpop.xlane.xlu0 %1470
      %1472 = vadd.xlane.f32.xlu0 %v1409
      %v1473 = vpop.xlane.xlu0 %1472
      %v1474 = vmul.f32 %v1377, %v1377
      %1475 = vmatprep.subr.mxu0 0.0
      %1476 = vmatpush1.xpose.msra.mxu0 %v1474
      %1477 = vmatprep.subr.mxu0 0.0
      %1478 = vmatpush1.xpose.msra.mxu0 0.0
      %1479 = vmatprep.subr.mxu0 0.0
      %1480 = vmatpush1.xpose.msra.mxu0 0.0
      %1481 = vmatprep.subr.mxu0 0.0
      %1482 = vmatpush1.xpose.msra.mxu0 0.0
      %1483 = vmatprep.subr.mxu0 0.0
      %1484 = vmatpush1.xpose.msra.mxu0 0.0
      %1485 = vmatprep.subr.mxu0 0.0
      %1486 = vmatpush1.xpose.msra.mxu0 0.0
      %1487 = vmatprep.subr.mxu0 0.0
      %1488 = vmatpush1.xpose.msra.mxu0 0.0
      %1489 = vmatprep.subr.mxu0 0.0
      %1490 = vmatpush1.xpose.msra.mxu0 0.0
      %1491 = vmatprep.subr.mxu0 0.0
      %1492 = vmatpush1.xpose.msra.mxu0 0.0
      %1493 = vmatprep.subr.mxu0 0.0
      %1494 = vmatpush1.xpose.msra.mxu0 0.0
      %1495 = vmatprep.subr.mxu0 0.0
      %1496 = vmatpush1.xpose.msra.mxu0 0.0
      %1497 = vmatprep.subr.mxu0 0.0
      %1498 = vmatpush1.xpose.msra.mxu0 0.0
      %1499 = vmatprep.subr.mxu0 0.0
      %1500 = vmatpush1.xpose.msra.mxu0 0.0
      %1501 = vmatprep.subr.mxu0 0.0
      %1502 = vmatpush1.xpose.msra.mxu0 0.0
      %1503 = vmatprep.subr.mxu0 0.0
      %1504 = vmatpush1.xpose.msra.mxu0 0.0
      %1505 = vmatprep.subr.mxu0 0.0
      %1506 = vmatpush1.xpose.msra.mxu0 0.0
      %1507 = vmatprep.subr.mxu0 0.0
      %1508 = vmatpush1.xpose.msra.mxu0 0.0
      %1509 = vmatprep.subr.mxu0 0.0
      %1510 = vmatpush1.xpose.msra.mxu0 0.0
      %1511 = vmatprep.subr.mxu0 0.0
      %1512 = vmatpush1.xpose.msra.mxu0 0.0
      %1513 = vmatprep.subr.mxu0 0.0
      %1514 = vmatpush1.xpose.msra.mxu0 0.0
      %1515 = vmatprep.subr.mxu0 0.0
      %1516 = vmatpush1.xpose.msra.mxu0 0.0
      %1517 = vmatprep.subr.mxu0 0.0
      %1518 = vmatpush1.xpose.msra.mxu0 0.0
      %1519 = vmatprep.subr.mxu0 0.0
      %1520 = vmatpush1.xpose.msra.mxu0 0.0
      %1521 = vmatprep.subr.mxu0 0.0
      %1522 = vmatpush1.xpose.msra.mxu0 0.0
      %1523 = vmatprep.subr.mxu0 0.0
      %1524 = vmatpush1.xpose.msra.mxu0 0.0
      %1525 = vmatprep.subr.mxu0 0.0
      %1526 = vmatpush1.xpose.msra.mxu0 0.0
      %1527 = vmatprep.subr.mxu0 0.0
      %1528 = vmatpush1.xpose.msra.mxu0 0.0
      %1529 = vmatprep.subr.mxu0 0.0
      %1530 = vmatpush1.xpose.msra.mxu0 0.0
      %1531 = vmatprep.subr.mxu0 0.0
      %1532 = vmatpush1.xpose.msra.mxu0 0.0
      %1533 = vmatprep.subr.mxu0 0.0
      %1534 = vmatpush1.xpose.msra.mxu0 0.0
      %1535 = vmatprep.subr.mxu0 0.0
      %1536 = vmatpush1.xpose.msra.mxu0 0.0
      %1537 = vmatprep.subr.mxu0 0.0
      %1538 = vmatpush1.xpose.msra.mxu0 0.0
      %1539 = vmatprep.mubr.f32.mxu0 0.0
      %1540 = vmatmul.mubr.f32.gmra.mrb[0].mxu0 1.0
      %v1541 = vpop.f32.mrb[0].mxu0
      %v1542 = vadd.f32 0.0, %v1541
      %v1543 = vpop.f32.mrb[0].mxu0
      %1544 = vdwg.mxu0
      %1545 = vmatprep.subr.mxu0 0.0
      %1546 = vmatpush1.xpose.msra.mxu0 %v1377
      %1547 = vmatprep.subr.mxu0 0.0
      %1548 = vmatpush1.xpose.msra.mxu0 0.0
      %1549 = vmatprep.subr.mxu0 0.0
      %1550 = vmatpush1.xpose.msra.mxu0 0.0
      %1551 = vmatprep.subr.mxu0 0.0
      %1552 = vmatpush1.xpose.msra.mxu0 0.0
      %1553 = vmatprep.subr.mxu0 0.0
      %1554 = vmatpush1.xpose.msra.mxu0 0.0
      %1555 = vmatprep.subr.mxu0 0.0
      %1556 = vmatpush1.xpose.msra.mxu0 0.0
      %1557 = vmatprep.subr.mxu0 0.0
      %1558 = vmatpush1.xpose.msra.mxu0 0.0
      %1559 = vmatprep.subr.mxu0 0.0
      %1560 = vmatpush1.xpose.msra.mxu0 0.0
      %1561 = vmatprep.subr.mxu0 0.0
      %1562 = vmatpush1.xpose.msra.mxu0 0.0
      %1563 = vmatprep.subr.mxu0 0.0
      %1564 = vmatpush1.xpose.msra.mxu0 0.0
      %1565 = vmatprep.subr.mxu0 0.0
      %1566 = vmatpush1.xpose.msra.mxu0 0.0
      %1567 = vmatprep.subr.mxu0 0.0
      %1568 = vmatpush1.xpose.msra.mxu0 0.0
      %1569 = vmatprep.subr.mxu0 0.0
      %1570 = vmatpush1.xpose.msra.mxu0 0.0
      %1571 = vmatprep.subr.mxu0 0.0
      %1572 = vmatpush1.xpose.msra.mxu0 0.0
      %1573 = vmatprep.subr.mxu0 0.0
      %1574 = vmatpush1.xpose.msra.mxu0 0.0
      %1575 = vmatprep.subr.mxu0 0.0
      %1576 = vmatpush1.xpose.msra.mxu0 0.0
      %1577 = vmatprep.subr.mxu0 0.0
      %1578 = vmatpush1.xpose.msra.mxu0 0.0
      %1579 = vmatprep.subr.mxu0 0.0
      %1580 = vmatpush1.xpose.msra.mxu0 0.0
      %1581 = vmatprep.subr.mxu0 0.0
      %1582 = vmatpush1.xpose.msra.mxu0 0.0
      %1583 = vmatprep.subr.mxu0 0.0
      %1584 = vmatpush1.xpose.msra.mxu0 0.0
      %1585 = vmatprep.subr.mxu0 0.0
      %1586 = vmatpush1.xpose.msra.mxu0 0.0
      %1587 = vmatprep.subr.mxu0 0.0
      %1588 = vmatpush1.xpose.msra.mxu0 0.0
      %1589 = vmatprep.subr.mxu0 0.0
      %1590 = vmatpush1.xpose.msra.mxu0 0.0
      %1591 = vmatprep.subr.mxu0 0.0
      %1592 = vmatpush1.xpose.msra.mxu0 0.0
      %1593 = vmatprep.subr.mxu0 0.0
      %1594 = vmatpush1.xpose.msra.mxu0 0.0
      %1595 = vmatprep.subr.mxu0 0.0
      %1596 = vmatpush1.xpose.msra.mxu0 0.0
      %1597 = vmatprep.subr.mxu0 0.0
      %1598 = vmatpush1.xpose.msra.mxu0 0.0
      %1599 = vmatprep.subr.mxu0 0.0
      %1600 = vmatpush1.xpose.msra.mxu0 0.0
      %1601 = vmatprep.subr.mxu0 0.0
      %1602 = vmatpush1.xpose.msra.mxu0 0.0
      %1603 = vmatprep.subr.mxu0 0.0
      %1604 = vmatpush1.xpose.msra.mxu0 0.0
      %1605 = vmatprep.subr.mxu0 0.0
      %1606 = vmatpush1.xpose.msra.mxu0 0.0
      %1607 = vmatprep.subr.mxu0 0.0
      %1608 = vmatpush1.xpose.msra.mxu0 0.0
      %1609 = vmatprep.mubr.f32.mxu0 0.0
      %1610 = vmatmul.mubr.f32.gmra.mrb[0].mxu0 %v1345
      %v1611 = vpop.f32.mrb[0].mxu0
      %v1612 = vadd.f32 0.0, %v1611
      %v1613 = vpop.f32.mrb[0].mxu0
      %1614 = vmatprep.mubr.f32.mxu0 0.0
      %1615 = vmatmul.mubr.f32.gmra.mrb[0].mxu0 %v1346
      %v1616 = vpop.f32.mrb[0].mxu0
      %v1617 = vadd.f32 0.0, %v1616
      %v1618 = vpop.f32.mrb[0].mxu0
      %1619 = vmatprep.mubr.f32.mxu0 0.0
      %1620 = vmatmul.mubr.f32.gmra.mrb[0].mxu0 %v1347
      %v1621 = vpop.f32.mrb[0].mxu0
      %v1622 = vadd.f32 0.0, %v1621
      %v1623 = vpop.f32.mrb[0].mxu0
      %1624 = vmatprep.mubr.f32.mxu0 0.0
      %1625 = vmatmul.mubr.f32.gmra.mrb[0].mxu0 %v1348
      %v1626 = vpop.f32.mrb[0].mxu0
      %v1627 = vadd.f32 0.0, %v1626
      %v1628 = vpop.f32.mrb[0].mxu0
      %1629 = vmatprep.mubr.f32.mxu0 0.0
      %1630 = vmatmul.mubr.f32.gmra.mrb[0].mxu0 %v1349
      %v1631 = vpop.f32.mrb[0].mxu0
      %v1632 = vadd.f32 0.0, %v1631
      %v1633 = vpop.f32.mrb[0].mxu0
      %1634 = vmatprep.mubr.f32.mxu0 0.0
      %1635 = vmatmul.mubr.f32.gmra.mrb[0].mxu0 %v1350
      %v1636 = vpop.f32.mrb[0].mxu0
      %v1637 = vadd.f32 0.0, %v1636
      %v1638 = vpop.f32.mrb[0].mxu0
      %1639 = vmatprep.mubr.f32.mxu0 0.0
      %1640 = vmatmul.mubr.f32.gmra.mrb[0].mxu0 %v1351
      %v1641 = vpop.f32.mrb[0].mxu0
      %v1642 = vadd.f32 0.0, %v1641
      %v1643 = vpop.f32.mrb[0].mxu0
      %1644 = vmatprep.mubr.f32.mxu0 0.0
      %1645 = vmatmul.mubr.f32.gmra.mrb[0].mxu0 %v1352
      %v1646 = vpop.f32.mrb[0].mxu0
      %v1647 = vadd.f32 0.0, %v1646
      %v1648 = vpop.f32.mrb[0].mxu0
      %1649 = vmatprep.mubr.f32.mxu0 0.0
      %1650 = vmatmul.mubr.f32.gmra.mrb[0].mxu0 %v1353
      %v1651 = vpop.f32.mrb[0].mxu0
      %v1652 = vadd.f32 0.0, %v1651
      %v1653 = vpop.f32.mrb[0].mxu0
      %1654 = vmatprep.mubr.f32.mxu0 0.0
      %1655 = vmatmul.mubr.f32.gmra.mrb[0].mxu0 %v1354
      %v1656 = vpop.f32.mrb[0].mxu0
      %v1657 = vadd.f32 0.0, %v1656
      %v1658 = vpop.f32.mrb[0].mxu0
      %1659 = vmatprep.mubr.f32.mxu0 0.0
      %1660 = vmatmul.mubr.f32.gmra.mrb[0].mxu0 %v1355
      %v1661 = vpop.f32.mrb[0].mxu0
      %v1662 = vadd.f32 0.0, %v1661
      %v1663 = vpop.f32.mrb[0].mxu0
      %1664 = vmatprep.mubr.f32.mxu0 0.0
      %1665 = vmatmul.mubr.f32.gmra.mrb[0].mxu0 %v1356
      %v1666 = vpop.f32.mrb[0].mxu0
      %v1667 = vadd.f32 0.0, %v1666
      %v1668 = vpop.f32.mrb[0].mxu0
      %1669 = vmatprep.mubr.f32.mxu0 0.0
      %1670 = vmatmul.mubr.f32.gmra.mrb[0].mxu0 %v1357
      %v1671 = vpop.f32.mrb[0].mxu0
      %v1672 = vadd.f32 0.0, %v1671
      %v1673 = vpop.f32.mrb[0].mxu0
      %1674 = vmatprep.mubr.f32.mxu0 0.0
      %1675 = vmatmul.mubr.f32.gmra.mrb[0].mxu0 %v1358
      %v1676 = vpop.f32.mrb[0].mxu0
      %v1677 = vadd.f32 0.0, %v1676
      %v1678 = vpop.f32.mrb[0].mxu0
      %1679 = vmatprep.mubr.f32.mxu0 0.0
      %1680 = vmatmul.mubr.f32.gmra.mrb[0].mxu0 %v1359
      %v1681 = vpop.f32.mrb[0].mxu0
      %v1682 = vadd.f32 0.0, %v1681
      %v1683 = vpop.f32.mrb[0].mxu0
      %1684 = vmatprep.mubr.f32.mxu0 0.0
      %1685 = vmatmul.mubr.f32.gmra.mrb[0].mxu0 %v1360
      %v1686 = vpop.f32.mrb[0].mxu0
      %v1687 = vadd.f32 0.0, %v1686
      %v1688 = vpop.f32.mrb[0].mxu0
      %1689 = vmatprep.mubr.f32.mxu0 0.0
      %1690 = vmatmul.mubr.f32.gmra.mrb[0].mxu0 %v1361
      %v1691 = vpop.f32.mrb[0].mxu0
      %v1692 = vadd.f32 0.0, %v1691
      %v1693 = vpop.f32.mrb[0].mxu0
      %1694 = vmatprep.mubr.f32.mxu0 0.0
      %1695 = vmatmul.mubr.f32.gmra.mrb[0].mxu0 %v1362
      %v1696 = vpop.f32.mrb[0].mxu0
      %v1697 = vadd.f32 0.0, %v1696
      %v1698 = vpop.f32.mrb[0].mxu0
      %1699 = vmatprep.mubr.f32.mxu0 0.0
      %1700 = vmatmul.mubr.f32.gmra.mrb[0].mxu0 %v1363
      %v1701 = vpop.f32.mrb[0].mxu0
      %v1702 = vadd.f32 0.0, %v1701
      %v1703 = vpop.f32.mrb[0].mxu0
      %1704 = vmatprep.mubr.f32.mxu0 0.0
      %1705 = vmatmul.mubr.f32.gmra.mrb[0].mxu0 %v1364
      %v1706 = vpop.f32.mrb[0].mxu0
      %v1707 = vadd.f32 0.0, %v1706
      %v1708 = vpop.f32.mrb[0].mxu0
      %1709 = vmatprep.mubr.f32.mxu0 0.0
      %1710 = vmatmul.mubr.f32.gmra.mrb[0].mxu0 %v1365
      %v1711 = vpop.f32.mrb[0].mxu0
      %v1712 = vadd.f32 0.0, %v1711
      %v1713 = vpop.f32.mrb[0].mxu0
      %1714 = vmatprep.mubr.f32.mxu0 0.0
      %1715 = vmatmul.mubr.f32.gmra.mrb[0].mxu0 %v1366
      %v1716 = vpop.f32.mrb[0].mxu0
      %v1717 = vadd.f32 0.0, %v1716
      %v1718 = vpop.f32.mrb[0].mxu0
      %1719 = vmatprep.mubr.f32.mxu0 0.0
      %1720 = vmatmul.mubr.f32.gmra.mrb[0].mxu0 %v1367
      %v1721 = vpop.f32.mrb[0].mxu0
      %v1722 = vadd.f32 0.0, %v1721
      %v1723 = vpop.f32.mrb[0].mxu0
      %1724 = vmatprep.mubr.f32.mxu0 0.0
      %1725 = vmatmul.mubr.f32.gmra.mrb[0].mxu0 %v1368
      %v1726 = vpop.f32.mrb[0].mxu0
      %v1727 = vadd.f32 0.0, %v1726
      %v1728 = vpop.f32.mrb[0].mxu0
      %1729 = vmatprep.mubr.f32.mxu0 0.0
      %1730 = vmatmul.mubr.f32.gmra.mrb[0].mxu0 %v1369
      %v1731 = vpop.f32.mrb[0].mxu0
      %v1732 = vadd.f32 0.0, %v1731
      %v1733 = vpop.f32.mrb[0].mxu0
      %1734 = vmatprep.mubr.f32.mxu0 0.0
      %1735 = vmatmul.mubr.f32.gmra.mrb[0].mxu0 %v1370
      %v1736 = vpop.f32.mrb[0].mxu0
      %v1737 = vadd.f32 0.0, %v1736
      %v1738 = vpop.f32.mrb[0].mxu0
      %1739 = vmatprep.mubr.f32.mxu0 0.0
      %1740 = vmatmul.mubr.f32.gmra.mrb[0].mxu0 %v1371
      %v1741 = vpop.f32.mrb[0].mxu0
      %v1742 = vadd.f32 0.0, %v1741
      %v1743 = vpop.f32.mrb[0].mxu0
      %1744 = vmatprep.mubr.f32.mxu0 0.0
      %1745 = vmatmul.mubr.f32.gmra.mrb[0].mxu0 %v1372
      %v1746 = vpop.f32.mrb[0].mxu0
      %v1747 = vadd.f32 0.0, %v1746
      %v1748 = vpop.f32.mrb[0].mxu0
      %1749 = vmatprep.mubr.f32.mxu0 0.0
      %1750 = vmatmul.mubr.f32.gmra.mrb[0].mxu0 %v1373
      %v1751 = vpop.f32.mrb[0].mxu0
      %v1752 = vadd.f32 0.0, %v1751
      %v1753 = vpop.f32.mrb[0].mxu0
      %1754 = vmatprep.mubr.f32.mxu0 0.0
      %1755 = vmatmul.mubr.f32.gmra.mrb[0].mxu0 %v1374
      %v1756 = vpop.f32.mrb[0].mxu0
      %v1757 = vadd.f32 0.0, %v1756
      %v1758 = vpop.f32.mrb[0].mxu0
      %1759 = vmatprep.mubr.f32.mxu0 0.0
      %1760 = vmatmul.mubr.f32.gmra.mrb[0].mxu0 %v1375
      %v1761 = vpop.f32.mrb[0].mxu0
      %v1762 = vadd.f32 0.0, %v1761
      %v1763 = vpop.f32.mrb[0].mxu0
      %1764 = vmatprep.mubr.f32.mxu0 0.0
      %1765 = vmatmul.mubr.f32.gmra.mrb[0].mxu0 %v1376
      %v1766 = vpop.f32.mrb[0].mxu0
      %v1767 = vadd.f32 0.0, %v1766
      %v1768 = vpop.f32.mrb[0].mxu0
      %1769 = vdwg.mxu0
      %v1770 = vlaneseq
      %v1771 = vshrl.u32 %v1770, 7
      %v1772 = vsub.s32 0, %v1771
      %v1773 = vrot.slane %v1542, %v1772
      %v1774 = vadd.f32 %v1411, %v1773
      %v1775 = vadd.f32 %v1413, %v1773
      %v1776 = vadd.f32 %v1415, %v1773
      %v1777 = vadd.f32 %v1417, %v1773
      %v1778 = vadd.f32 %v1419, %v1773
      %v1779 = vadd.f32 %v1421, %v1773
      %v1780 = vadd.f32 %v1423, %v1773
      %v1781 = vadd.f32 %v1425, %v1773
      %v1782 = vadd.f32 %v1427, %v1773
      %v1783 = vadd.f32 %v1429, %v1773
      %v1784 = vadd.f32 %v1431, %v1773
      %v1785 = vadd.f32 %v1433, %v1773
      %v1786 = vadd.f32 %v1435, %v1773
      %v1787 = vadd.f32 %v1437, %v1773
      %v1788 = vadd.f32 %v1439, %v1773
      %v1789 = vadd.f32 %v1441, %v1773
      %v1790 = vadd.f32 %v1443, %v1773
      %v1791 = vadd.f32 %v1445, %v1773
      %v1792 = vadd.f32 %v1447, %v1773
      %v1793 = vadd.f32 %v1449, %v1773
      %v1794 = vadd.f32 %v1451, %v1773
      %v1795 = vadd.f32 %v1453, %v1773
      %v1796 = vadd.f32 %v1455, %v1773
      %v1797 = vadd.f32 %v1457, %v1773
      %v1798 = vadd.f32 %v1459, %v1773
      %v1799 = vadd.f32 %v1461, %v1773
      %v1800 = vadd.f32 %v1463, %v1773
      %v1801 = vadd.f32 %v1465, %v1773
      %v1802 = vadd.f32 %v1467, %v1773
      %v1803 = vadd.f32 %v1469, %v1773
      %v1804 = vadd.f32 %v1471, %v1773
      %v1805 = vadd.f32 %v1473, %v1773
      %v1806 = vmul.f32 %v1612, 2.0
      %v1807 = vmul.f32 %v1617, 2.0
      %v1808 = vmul.f32 %v1622, 2.0
      %v1809 = vmul.f32 %v1627, 2.0
      %v1810 = vmul.f32 %v1632, 2.0
      %v1811 = vmul.f32 %v1637, 2.0
      %v1812 = vmul.f32 %v1642, 2.0
      %v1813 = vmul.f32 %v1647, 2.0
      %v1814 = vmul.f32 %v1652, 2.0
      %v1815 = vmul.f32 %v1657, 2.0
      %v1816 = vmul.f32 %v1662, 2.0
      %v1817 = vmul.f32 %v1667, 2.0
      %v1818 = vmul.f32 %v1672, 2.0
      %v1819 = vmul.f32 %v1677, 2.0
      %v1820 = vmul.f32 %v1682, 2.0
      %v1821 = vmul.f32 %v1687, 2.0
      %v1822 = vmul.f32 %v1692, 2.0
      %v1823 = vmul.f32 %v1697, 2.0
      %v1824 = vmul.f32 %v1702, 2.0
      %v1825 = vmul.f32 %v1707, 2.0
      %v1826 = vmul.f32 %v1712, 2.0
      %v1827 = vmul.f32 %v1717, 2.0
      %v1828 = vmul.f32 %v1722, 2.0
      %v1829 = vmul.f32 %v1727, 2.0
      %v1830 = vmul.f32 %v1732, 2.0
      %v1831 = vmul.f32 %v1737, 2.0
      %v1832 = vmul.f32 %v1742, 2.0
      %v1833 = vmul.f32 %v1747, 2.0
      %v1834 = vmul.f32 %v1752, 2.0
      %v1835 = vmul.f32 %v1757, 2.0
      %v1836 = vmul.f32 %v1762, 2.0
      %v1837 = vmul.f32 %v1767, 2.0
      %v1838 = vsub.f32 %v1774, %v1806
      %v1839 = vsub.f32 %v1775, %v1807
      %v1840 = vsub.f32 %v1776, %v1808
      %v1841 = vsub.f32 %v1777, %v1809
      %v1842 = vsub.f32 %v1778, %v1810
      %v1843 = vsub.f32 %v1779, %v1811
      %v1844 = vsub.f32 %v1780, %v1812
      %v1845 = vsub.f32 %v1781, %v1813
      %v1846 = vsub.f32 %v1782, %v1814
      %v1847 = vsub.f32 %v1783, %v1815
      %v1848 = vsub.f32 %v1784, %v1816
      %v1849 = vsub.f32 %v1785, %v1817
      %v1850 = vsub.f32 %v1786, %v1818
      %v1851 = vsub.f32 %v1787, %v1819
      %v1852 = vsub.f32 %v1788, %v1820
      %v1853 = vsub.f32 %v1789, %v1821
      %v1854 = vsub.f32 %v1790, %v1822
      %v1855 = vsub.f32 %v1791, %v1823
      %v1856 = vsub.f32 %v1792, %v1824
      %v1857 = vsub.f32 %v1793, %v1825
      %v1858 = vsub.f32 %v1794, %v1826
      %v1859 = vsub.f32 %v1795, %v1827
      %v1860 = vsub.f32 %v1796, %v1828
      %v1861 = vsub.f32 %v1797, %v1829
      %v1862 = vsub.f32 %v1798, %v1830
      %v1863 = vsub.f32 %v1799, %v1831
      %v1864 = vsub.f32 %v1800, %v1832
      %v1865 = vsub.f32 %v1801, %v1833
      %v1866 = vsub.f32 %v1802, %v1834
      %v1867 = vsub.f32 %v1803, %v1835
      %v1868 = vsub.f32 %v1804, %v1836
      %v1869 = vsub.f32 %v1805, %v1837
      %v1870 = vmax.f32 %v1838, 0.0
      %v1871 = vmax.f32 %v1839, 0.0
      %v1872 = vmax.f32 %v1840, 0.0
      %v1873 = vmax.f32 %v1841, 0.0
      %v1874 = vmax.f32 %v1842, 0.0
      %v1875 = vmax.f32 %v1843, 0.0
      %v1876 = vmax.f32 %v1844, 0.0
      %v1877 = vmax.f32 %v1845, 0.0
      %v1878 = vmax.f32 %v1846, 0.0
      %v1879 = vmax.f32 %v1847, 0.0
      %v1880 = vmax.f32 %v1848, 0.0
      %v1881 = vmax.f32 %v1849, 0.0
      %v1882 = vmax.f32 %v1850, 0.0
      %v1883 = vmax.f32 %v1851, 0.0
      %v1884 = vmax.f32 %v1852, 0.0
      %v1885 = vmax.f32 %v1853, 0.0
      %v1886 = vmax.f32 %v1854, 0.0
      %v1887 = vmax.f32 %v1855, 0.0
      %v1888 = vmax.f32 %v1856, 0.0
      %v1889 = vmax.f32 %v1857, 0.0
      %v1890 = vmax.f32 %v1858, 0.0
      %v1891 = vmax.f32 %v1859, 0.0
      %v1892 = vmax.f32 %v1860, 0.0
      %v1893 = vmax.f32 %v1861, 0.0
      %v1894 = vmax.f32 %v1862, 0.0
      %v1895 = vmax.f32 %v1863, 0.0
      %v1896 = vmax.f32 %v1864, 0.0
      %v1897 = vmax.f32 %v1865, 0.0
      %v1898 = vmax.f32 %v1866, 0.0
      %v1899 = vmax.f32 %v1867, 0.0
      %v1900 = vmax.f32 %v1868, 0.0
      %v1901 = vmax.f32 %v1869, 0.0
      %vm1902 = vcmask 64512
      %v1903 = vsel %vm1902, %v1870, inf
      %1904 = vmin.xlane.f32.xlu0 %v1903
      %v1905 = vpop.xlane.xlu0 %1904
      %v1906 = vsel %vm1902, %v1871, inf
      %1907 = vmin.xlane.f32.xlu0 %v1906
      %v1908 = vpop.xlane.xlu0 %1907
      %v1909 = vsel %vm1902, %v1872, inf
      %1910 = vmin.xlane.f32.xlu0 %v1909
      %v1911 = vpop.xlane.xlu0 %1910
      %v1912 = vsel %vm1902, %v1873, inf
      %1913 = vmin.xlane.f32.xlu0 %v1912
      %v1914 = vpop.xlane.xlu0 %1913
      %v1915 = vsel %vm1902, %v1874, inf
      %1916 = vmin.xlane.f32.xlu0 %v1915
      %v1917 = vpop.xlane.xlu0 %1916
      %v1918 = vsel %vm1902, %v1875, inf
      %1919 = vmin.xlane.f32.xlu0 %v1918
      %v1920 = vpop.xlane.xlu0 %1919
      %v1921 = vsel %vm1902, %v1876, inf
      %1922 = vmin.xlane.f32.xlu0 %v1921
      %v1923 = vpop.xlane.xlu0 %1922
      %v1924 = vsel %vm1902, %v1877, inf
      %1925 = vmin.xlane.f32.xlu0 %v1924
      %v1926 = vpop.xlane.xlu0 %1925
      %v1927 = vsel %vm1902, %v1878, inf
      %1928 = vmin.xlane.f32.xlu0 %v1927
      %v1929 = vpop.xlane.xlu0 %1928
      %v1930 = vsel %vm1902, %v1879, inf
      %1931 = vmin.xlane.f32.xlu0 %v1930
      %v1932 = vpop.xlane.xlu0 %1931
      %v1933 = vsel %vm1902, %v1880, inf
      %1934 = vmin.xlane.f32.xlu0 %v1933
      %v1935 = vpop.xlane.xlu0 %1934
      %v1936 = vsel %vm1902, %v1881, inf
      %1937 = vmin.xlane.f32.xlu0 %v1936
      %v1938 = vpop.xlane.xlu0 %1937
      %v1939 = vsel %vm1902, %v1882, inf
      %1940 = vmin.xlane.f32.xlu0 %v1939
      %v1941 = vpop.xlane.xlu0 %1940
      %v1942 = vsel %vm1902, %v1883, inf
      %1943 = vmin.xlane.f32.xlu0 %v1942
      %v1944 = vpop.xlane.xlu0 %1943
      %v1945 = vsel %vm1902, %v1884, inf
      %1946 = vmin.xlane.f32.xlu0 %v1945
      %v1947 = vpop.xlane.xlu0 %1946
      %v1948 = vsel %vm1902, %v1885, inf
      %1949 = vmin.xlane.f32.xlu0 %v1948
      %v1950 = vpop.xlane.xlu0 %1949
      %v1951 = vsel %vm1902, %v1886, inf
      %1952 = vmin.xlane.f32.xlu0 %v1951
      %v1953 = vpop.xlane.xlu0 %1952
      %v1954 = vsel %vm1902, %v1887, inf
      %1955 = vmin.xlane.f32.xlu0 %v1954
      %v1956 = vpop.xlane.xlu0 %1955
      %v1957 = vsel %vm1902, %v1888, inf
      %1958 = vmin.xlane.f32.xlu0 %v1957
      %v1959 = vpop.xlane.xlu0 %1958
      %v1960 = vsel %vm1902, %v1889, inf
      %1961 = vmin.xlane.f32.xlu0 %v1960
      %v1962 = vpop.xlane.xlu0 %1961
      %v1963 = vsel %vm1902, %v1890, inf
      %1964 = vmin.xlane.f32.xlu0 %v1963
      %v1965 = vpop.xlane.xlu0 %1964
      %v1966 = vsel %vm1902, %v1891, inf
      %1967 = vmin.xlane.f32.xlu0 %v1966
      %v1968 = vpop.xlane.xlu0 %1967
      %v1969 = vsel %vm1902, %v1892, inf
      %1970 = vmin.xlane.f32.xlu0 %v1969
      %v1971 = vpop.xlane.xlu0 %1970
      %v1972 = vsel %vm1902, %v1893, inf
      %1973 = vmin.xlane.f32.xlu0 %v1972
      %v1974 = vpop.xlane.xlu0 %1973
      %v1975 = vsel %vm1902, %v1894, inf
      %1976 = vmin.xlane.f32.xlu0 %v1975
      %v1977 = vpop.xlane.xlu0 %1976
      %v1978 = vsel %vm1902, %v1895, inf
      %1979 = vmin.xlane.f32.xlu0 %v1978
      %v1980 = vpop.xlane.xlu0 %1979
      %v1981 = vsel %vm1902, %v1896, inf
      %1982 = vmin.xlane.f32.xlu0 %v1981
      %v1983 = vpop.xlane.xlu0 %1982
      %v1984 = vsel %vm1902, %v1897, inf
      %1985 = vmin.xlane.f32.xlu0 %v1984
      %v1986 = vpop.xlane.xlu0 %1985
      %v1987 = vsel %vm1902, %v1898, inf
      %1988 = vmin.xlane.f32.xlu0 %v1987
      %v1989 = vpop.xlane.xlu0 %1988
      %v1990 = vsel %vm1902, %v1899, inf
      %1991 = vmin.xlane.f32.xlu0 %v1990
      %v1992 = vpop.xlane.xlu0 %1991
      %v1993 = vsel %vm1902, %v1900, inf
      %1994 = vmin.xlane.f32.xlu0 %v1993
      %v1995 = vpop.xlane.xlu0 %1994
      %v1996 = vsel %vm1902, %v1901, inf
      %1997 = vmin.xlane.f32.xlu0 %v1996
      %v1998 = vpop.xlane.xlu0 %1997
      %v1999 = vrsqrt.pop %v1905
      %v2000 = vmul.f32 %v1905, %v1999
      %vm2001 = vcmp.eq.f32.partialorder %v1905, inf
      %v2002 = vsel %vm2001, %v1905, %v2000
      %vm2003 = vcmp.eq.f32.partialorder %v1905, 0.0
      %v2004 = vand.u32 %v1905, 2147483648
      %v2005 = vsel %vm2003, %v2004, %v2002
      %v2006 = vrsqrt.pop %v1908
      %v2007 = vmul.f32 %v1908, %v2006
      %vm2008 = vcmp.eq.f32.partialorder %v1908, inf
      %v2009 = vsel %vm2008, %v1908, %v2007
      %vm2010 = vcmp.eq.f32.partialorder %v1908, 0.0
      %v2011 = vand.u32 %v1908, 2147483648
      %v2012 = vsel %vm2010, %v2011, %v2009
      %v2013 = vrsqrt.pop %v1911
      %v2014 = vmul.f32 %v1911, %v2013
      %vm2015 = vcmp.eq.f32.partialorder %v1911, inf
      %v2016 = vsel %vm2015, %v1911, %v2014
      %vm2017 = vcmp.eq.f32.partialorder %v1911, 0.0
      %v2018 = vand.u32 %v1911, 2147483648
      %v2019 = vsel %vm2017, %v2018, %v2016
      %v2020 = vrsqrt.pop %v1914
      %v2021 = vmul.f32 %v1914, %v2020
      %vm2022 = vcmp.eq.f32.partialorder %v1914, inf
      %v2023 = vsel %vm2022, %v1914, %v2021
      %vm2024 = vcmp.eq.f32.partialorder %v1914, 0.0
      %v2025 = vand.u32 %v1914, 2147483648
      %v2026 = vsel %vm2024, %v2025, %v2023
      %v2027 = vrsqrt.pop %v1917
      %v2028 = vmul.f32 %v1917, %v2027
      %vm2029 = vcmp.eq.f32.partialorder %v1917, inf
      %v2030 = vsel %vm2029, %v1917, %v2028
      %vm2031 = vcmp.eq.f32.partialorder %v1917, 0.0
      %v2032 = vand.u32 %v1917, 2147483648
      %v2033 = vsel %vm2031, %v2032, %v2030
      %v2034 = vrsqrt.pop %v1920
      %v2035 = vmul.f32 %v1920, %v2034
      %vm2036 = vcmp.eq.f32.partialorder %v1920, inf
      %v2037 = vsel %vm2036, %v1920, %v2035
      %vm2038 = vcmp.eq.f32.partialorder %v1920, 0.0
      %v2039 = vand.u32 %v1920, 2147483648
      %v2040 = vsel %vm2038, %v2039, %v2037
      %v2041 = vrsqrt.pop %v1923
      %v2042 = vmul.f32 %v1923, %v2041
      %vm2043 = vcmp.eq.f32.partialorder %v1923, inf
      %v2044 = vsel %vm2043, %v1923, %v2042
      %vm2045 = vcmp.eq.f32.partialorder %v1923, 0.0
      %v2046 = vand.u32 %v1923, 2147483648
      %v2047 = vsel %vm2045, %v2046, %v2044
      %v2048 = vrsqrt.pop %v1926
      %v2049 = vmul.f32 %v1926, %v2048
      %vm2050 = vcmp.eq.f32.partialorder %v1926, inf
      %v2051 = vsel %vm2050, %v1926, %v2049
      %vm2052 = vcmp.eq.f32.partialorder %v1926, 0.0
      %v2053 = vand.u32 %v1926, 2147483648
      %v2054 = vsel %vm2052, %v2053, %v2051
      %v2055 = vrsqrt.pop %v1929
      %v2056 = vmul.f32 %v1929, %v2055
      %vm2057 = vcmp.eq.f32.partialorder %v1929, inf
      %v2058 = vsel %vm2057, %v1929, %v2056
      %vm2059 = vcmp.eq.f32.partialorder %v1929, 0.0
      %v2060 = vand.u32 %v1929, 2147483648
      %v2061 = vsel %vm2059, %v2060, %v2058
      %v2062 = vrsqrt.pop %v1932
      %v2063 = vmul.f32 %v1932, %v2062
      %vm2064 = vcmp.eq.f32.partialorder %v1932, inf
      %v2065 = vsel %vm2064, %v1932, %v2063
      %vm2066 = vcmp.eq.f32.partialorder %v1932, 0.0
      %v2067 = vand.u32 %v1932, 2147483648
      %v2068 = vsel %vm2066, %v2067, %v2065
      %v2069 = vrsqrt.pop %v1935
      %v2070 = vmul.f32 %v1935, %v2069
      %vm2071 = vcmp.eq.f32.partialorder %v1935, inf
      %v2072 = vsel %vm2071, %v1935, %v2070
      %vm2073 = vcmp.eq.f32.partialorder %v1935, 0.0
      %v2074 = vand.u32 %v1935, 2147483648
      %v2075 = vsel %vm2073, %v2074, %v2072
      %v2076 = vrsqrt.pop %v1938
      %v2077 = vmul.f32 %v1938, %v2076
      %vm2078 = vcmp.eq.f32.partialorder %v1938, inf
      %v2079 = vsel %vm2078, %v1938, %v2077
      %vm2080 = vcmp.eq.f32.partialorder %v1938, 0.0
      %v2081 = vand.u32 %v1938, 2147483648
      %v2082 = vsel %vm2080, %v2081, %v2079
      %v2083 = vrsqrt.pop %v1941
      %v2084 = vmul.f32 %v1941, %v2083
      %vm2085 = vcmp.eq.f32.partialorder %v1941, inf
      %v2086 = vsel %vm2085, %v1941, %v2084
      %vm2087 = vcmp.eq.f32.partialorder %v1941, 0.0
      %v2088 = vand.u32 %v1941, 2147483648
      %v2089 = vsel %vm2087, %v2088, %v2086
      %v2090 = vrsqrt.pop %v1944
      %v2091 = vmul.f32 %v1944, %v2090
      %vm2092 = vcmp.eq.f32.partialorder %v1944, inf
      %v2093 = vsel %vm2092, %v1944, %v2091
      %vm2094 = vcmp.eq.f32.partialorder %v1944, 0.0
      %v2095 = vand.u32 %v1944, 2147483648
      %v2096 = vsel %vm2094, %v2095, %v2093
      %v2097 = vrsqrt.pop %v1947
      %v2098 = vmul.f32 %v1947, %v2097
      %vm2099 = vcmp.eq.f32.partialorder %v1947, inf
      %v2100 = vsel %vm2099, %v1947, %v2098
      %vm2101 = vcmp.eq.f32.partialorder %v1947, 0.0
      %v2102 = vand.u32 %v1947, 2147483648
      %v2103 = vsel %vm2101, %v2102, %v2100
      %v2104 = vrsqrt.pop %v1950
      %v2105 = vmul.f32 %v1950, %v2104
      %vm2106 = vcmp.eq.f32.partialorder %v1950, inf
      %v2107 = vsel %vm2106, %v1950, %v2105
      %vm2108 = vcmp.eq.f32.partialorder %v1950, 0.0
      %v2109 = vand.u32 %v1950, 2147483648
      %v2110 = vsel %vm2108, %v2109, %v2107
      %v2111 = vrsqrt.pop %v1953
      %v2112 = vmul.f32 %v1953, %v2111
      %vm2113 = vcmp.eq.f32.partialorder %v1953, inf
      %v2114 = vsel %vm2113, %v1953, %v2112
      %vm2115 = vcmp.eq.f32.partialorder %v1953, 0.0
      %v2116 = vand.u32 %v1953, 2147483648
      %v2117 = vsel %vm2115, %v2116, %v2114
      %v2118 = vrsqrt.pop %v1956
      %v2119 = vmul.f32 %v1956, %v2118
      %vm2120 = vcmp.eq.f32.partialorder %v1956, inf
      %v2121 = vsel %vm2120, %v1956, %v2119
      %vm2122 = vcmp.eq.f32.partialorder %v1956, 0.0
      %v2123 = vand.u32 %v1956, 2147483648
      %v2124 = vsel %vm2122, %v2123, %v2121
      %v2125 = vrsqrt.pop %v1959
      %v2126 = vmul.f32 %v1959, %v2125
      %vm2127 = vcmp.eq.f32.partialorder %v1959, inf
      %v2128 = vsel %vm2127, %v1959, %v2126
      %vm2129 = vcmp.eq.f32.partialorder %v1959, 0.0
      %v2130 = vand.u32 %v1959, 2147483648
      %v2131 = vsel %vm2129, %v2130, %v2128
      %v2132 = vrsqrt.pop %v1962
      %v2133 = vmul.f32 %v1962, %v2132
      %vm2134 = vcmp.eq.f32.partialorder %v1962, inf
      %v2135 = vsel %vm2134, %v1962, %v2133
      %vm2136 = vcmp.eq.f32.partialorder %v1962, 0.0
      %v2137 = vand.u32 %v1962, 2147483648
      %v2138 = vsel %vm2136, %v2137, %v2135
      %v2139 = vrsqrt.pop %v1965
      %v2140 = vmul.f32 %v1965, %v2139
      %vm2141 = vcmp.eq.f32.partialorder %v1965, inf
      %v2142 = vsel %vm2141, %v1965, %v2140
      %vm2143 = vcmp.eq.f32.partialorder %v1965, 0.0
      %v2144 = vand.u32 %v1965, 2147483648
      %v2145 = vsel %vm2143, %v2144, %v2142
      %v2146 = vrsqrt.pop %v1968
      %v2147 = vmul.f32 %v1968, %v2146
      %vm2148 = vcmp.eq.f32.partialorder %v1968, inf
      %v2149 = vsel %vm2148, %v1968, %v2147
      %vm2150 = vcmp.eq.f32.partialorder %v1968, 0.0
      %v2151 = vand.u32 %v1968, 2147483648
      %v2152 = vsel %vm2150, %v2151, %v2149
      %v2153 = vrsqrt.pop %v1971
      %v2154 = vmul.f32 %v1971, %v2153
      %vm2155 = vcmp.eq.f32.partialorder %v1971, inf
      %v2156 = vsel %vm2155, %v1971, %v2154
      %vm2157 = vcmp.eq.f32.partialorder %v1971, 0.0
      %v2158 = vand.u32 %v1971, 2147483648
      %v2159 = vsel %vm2157, %v2158, %v2156
      %v2160 = vrsqrt.pop %v1974
      %v2161 = vmul.f32 %v1974, %v2160
      %vm2162 = vcmp.eq.f32.partialorder %v1974, inf
      %v2163 = vsel %vm2162, %v1974, %v2161
      %vm2164 = vcmp.eq.f32.partialorder %v1974, 0.0
      %v2165 = vand.u32 %v1974, 2147483648
      %v2166 = vsel %vm2164, %v2165, %v2163
      %v2167 = vrsqrt.pop %v1977
      %v2168 = vmul.f32 %v1977, %v2167
      %vm2169 = vcmp.eq.f32.partialorder %v1977, inf
      %v2170 = vsel %vm2169, %v1977, %v2168
      %vm2171 = vcmp.eq.f32.partialorder %v1977, 0.0
      %v2172 = vand.u32 %v1977, 2147483648
      %v2173 = vsel %vm2171, %v2172, %v2170
      %v2174 = vrsqrt.pop %v1980
      %v2175 = vmul.f32 %v1980, %v2174
      %vm2176 = vcmp.eq.f32.partialorder %v1980, inf
      %v2177 = vsel %vm2176, %v1980, %v2175
      %vm2178 = vcmp.eq.f32.partialorder %v1980, 0.0
      %v2179 = vand.u32 %v1980, 2147483648
      %v2180 = vsel %vm2178, %v2179, %v2177
      %v2181 = vrsqrt.pop %v1983
      %v2182 = vmul.f32 %v1983, %v2181
      %vm2183 = vcmp.eq.f32.partialorder %v1983, inf
      %v2184 = vsel %vm2183, %v1983, %v2182
      %vm2185 = vcmp.eq.f32.partialorder %v1983, 0.0
      %v2186 = vand.u32 %v1983, 2147483648
      %v2187 = vsel %vm2185, %v2186, %v2184
      %v2188 = vrsqrt.pop %v1986
      %v2189 = vmul.f32 %v1986, %v2188
      %vm2190 = vcmp.eq.f32.partialorder %v1986, inf
      %v2191 = vsel %vm2190, %v1986, %v2189
      %vm2192 = vcmp.eq.f32.partialorder %v1986, 0.0
      %v2193 = vand.u32 %v1986, 2147483648
      %v2194 = vsel %vm2192, %v2193, %v2191
      %v2195 = vrsqrt.pop %v1989
      %v2196 = vmul.f32 %v1989, %v2195
      %vm2197 = vcmp.eq.f32.partialorder %v1989, inf
      %v2198 = vsel %vm2197, %v1989, %v2196
      %vm2199 = vcmp.eq.f32.partialorder %v1989, 0.0
      %v2200 = vand.u32 %v1989, 2147483648
      %v2201 = vsel %vm2199, %v2200, %v2198
      %v2202 = vrsqrt.pop %v1992
      %v2203 = vmul.f32 %v1992, %v2202
      %vm2204 = vcmp.eq.f32.partialorder %v1992, inf
      %v2205 = vsel %vm2204, %v1992, %v2203
      %vm2206 = vcmp.eq.f32.partialorder %v1992, 0.0
      %v2207 = vand.u32 %v1992, 2147483648
      %v2208 = vsel %vm2206, %v2207, %v2205
      %v2209 = vrsqrt.pop %v1995
      %v2210 = vmul.f32 %v1995, %v2209
      %vm2211 = vcmp.eq.f32.partialorder %v1995, inf
      %v2212 = vsel %vm2211, %v1995, %v2210
      %vm2213 = vcmp.eq.f32.partialorder %v1995, 0.0
      %v2214 = vand.u32 %v1995, 2147483648
      %v2215 = vsel %vm2213, %v2214, %v2212
      %v2216 = vrsqrt.pop %v1998
      %v2217 = vmul.f32 %v1998, %v2216
      %vm2218 = vcmp.eq.f32.partialorder %v1998, inf
      %v2219 = vsel %vm2218, %v1998, %v2217
      %vm2220 = vcmp.eq.f32.partialorder %v1998, 0.0
      %v2221 = vand.u32 %v1998, 2147483648
      %v2222 = vsel %vm2220, %v2221, %v2219
      %v2223 = vsel %vm1028, %v2005, 0.0
      %v2224 = vsel %vm1028, %v2012, 0.0
      %v2225 = vadd.f32 %v2223, %v2224
      %v2226 = vsel %vm1028, %v2019, 0.0
      %v2227 = vadd.f32 %v2225, %v2226
      %v2228 = vsel %vm1028, %v2026, 0.0
      %v2229 = vadd.f32 %v2227, %v2228
      %v2230 = vsel %vm1028, %v2033, 0.0
      %v2231 = vadd.f32 %v2229, %v2230
      %v2232 = vsel %vm1028, %v2040, 0.0
      %v2233 = vadd.f32 %v2231, %v2232
      %v2234 = vsel %vm1028, %v2047, 0.0
      %v2235 = vadd.f32 %v2233, %v2234
      %v2236 = vsel %vm1028, %v2054, 0.0
      %v2237 = vadd.f32 %v2235, %v2236
      %v2238 = vsel %vm1028, %v2061, 0.0
      %v2239 = vadd.f32 %v2237, %v2238
      %v2240 = vsel %vm1028, %v2068, 0.0
      %v2241 = vadd.f32 %v2239, %v2240
      %v2242 = vsel %vm1028, %v2075, 0.0
      %v2243 = vadd.f32 %v2241, %v2242
      %v2244 = vsel %vm1028, %v2082, 0.0
      %v2245 = vadd.f32 %v2243, %v2244
      %v2246 = vsel %vm1028, %v2089, 0.0
      %v2247 = vadd.f32 %v2245, %v2246
      %v2248 = vsel %vm1028, %v2096, 0.0
      %v2249 = vadd.f32 %v2247, %v2248
      %v2250 = vsel %vm1028, %v2103, 0.0
      %v2251 = vadd.f32 %v2249, %v2250
      %v2252 = vsel %vm1028, %v2110, 0.0
      %v2253 = vadd.f32 %v2251, %v2252
      %v2254 = vsel %vm1028, %v2117, 0.0
      %v2255 = vadd.f32 %v2253, %v2254
      %v2256 = vsel %vm1028, %v2124, 0.0
      %v2257 = vadd.f32 %v2255, %v2256
      %v2258 = vsel %vm1028, %v2131, 0.0
      %v2259 = vadd.f32 %v2257, %v2258
      %v2260 = vsel %vm1028, %v2138, 0.0
      %v2261 = vadd.f32 %v2259, %v2260
      %v2262 = vsel %vm1028, %v2145, 0.0
      %v2263 = vadd.f32 %v2261, %v2262
      %v2264 = vsel %vm1028, %v2152, 0.0
      %v2265 = vadd.f32 %v2263, %v2264
      %v2266 = vsel %vm1028, %v2159, 0.0
      %v2267 = vadd.f32 %v2265, %v2266
      %v2268 = vsel %vm1028, %v2166, 0.0
      %v2269 = vadd.f32 %v2267, %v2268
      %v2270 = vsel %vm1028, %v2173, 0.0
      %v2271 = vadd.f32 %v2269, %v2270
      %v2272 = vsel %vm1028, %v2180, 0.0
      %v2273 = vadd.f32 %v2271, %v2272
      %v2274 = vsel %vm1028, %v2187, 0.0
      %v2275 = vadd.f32 %v2273, %v2274
      %v2276 = vsel %vm1028, %v2194, 0.0
      %v2277 = vadd.f32 %v2275, %v2276
      %v2278 = vsel %vm1028, %v2201, 0.0
      %v2279 = vadd.f32 %v2277, %v2278
      %v2280 = vsel %vm1028, %v2208, 0.0
      %v2281 = vadd.f32 %v2279, %v2280
      %v2282 = vsel %vm1028, %v2215, 0.0
      %v2283 = vadd.f32 %v2281, %v2282
      %v2284 = vsel %vm1028, %v2222, 0.0
      %v2285 = vadd.f32 %v2283, %v2284
      %2286 = vadd.xlane.f32.xlu0 %v2285
      %v2287 = vpop.xlane.xlu0 %2286
      %v2288 = vrot.slane %v2287, 4
      %v2289 = vadd.f32 %v2287, %v2288
      %v2290 = vrot.slane %v2289, 2
      %v2291 = vadd.f32 %v2289, %v2290
      %v2292 = vrot.slane %v2291, 1
      %v2293 = vadd.f32 %v2291, %v2292
      %s2294 = vtos %v2293
      %v2295 = vrcp.pop 256.0
      %s2296 = vtos %v2295
      %s2297 = smul.f32 %s2294, %s2296
      %v2298 = vlaneseq
      %v2299 = vand.u32 %v2298, 127
      %vm2300 = vcmp.eq.s32.totalorder %v2299, 0
      %v2301 = vstv %s1202
      %v2302 = vsel %vm2300, %v2301, 0.0
      %vm2303 = vcmp.eq.s32.totalorder %v2299, 1
      %v2304 = vstv %s1293
      %v2305 = vsel %vm2303, %v2304, 0.0
      %v2306 = vadd.f32 %v2302, %v2305
      %vm2307 = vcmp.eq.s32.totalorder %v2299, 2
      %v2308 = vstv %s1344
      %v2309 = vsel %vm2307, %v2308, 0.0
      %v2310 = vadd.f32 %v2306, %v2309
      %vm2311 = vcmp.eq.s32.totalorder %v2299, 3
      %v2312 = vstv %s2297
      %v2313 = vsel %vm2311, %v2312, 0.0
      %v2314 = vadd.f32 %v2310, %v2313
      %2315 = vst [vmem:[#allocation16] sm:$0x1] %v2314
    $region69: #{tpu_custom_call.1} parent=1 // pred_fallthru
      _
    // Predicated region
    $region70: #{tpu_custom_call.1} parent=1 // pred_check
      _
    $region71: #{tpu_custom_call.1} parent=1 // pred_check_branch
      %2317 = sbr.rel (0) target = $region73
    $region72: #{tpu_custom_call.1} parent=1 // pred_region
      %s2319 = ssub.s32 16, 16
      %2320 = vsyncadd [#allocation6], %s2319
      %s2322 = sshll.u32 [#allocation16], 4
      %s2323 = int_to_ptr.vmem [resolvable:$true] %s2322
      %2325 = dma.vmem_to_hbm [thread:$0]  %s2323, 16, %s8, [#allocation6]
    $region73: #{tpu_custom_call.1} parent=1 // pred_fallthru
      _
    // Predicated region
    $region74: #{tpu_custom_call.1} parent=1 // pred_check
      _
    $region75: #{tpu_custom_call.1} parent=1 // pred_check_branch
      %2327 = sbr.rel (0) target = $region77
    $region76: #{tpu_custom_call.1} parent=1 // pred_region
      %2328 = dma.done [#allocation6], 16
    $region77: #{tpu_custom_call.1} parent=1 // pred_fallthru
      _
    %2329 = vsyncpa [#allocation5], 1
    %2330 = vsyncpa [#allocation8], 1
    %2331 = vsyncpa [#allocation11], 1
    %2332 = vsyncpa [#allocation14], 1
    %2333 = vsyncpa [#allocation6], 1

</llo_original>
